<compile_context>
chip_gen: v7x
topology: tpu7x:2x2x1
jax: 0.10.0
libtpu: 0.0.40
codegen_flags: <defaults>
</compile_context>

<pallas_src>
import functools

import jax
import jax.numpy as jnp
from jax.experimental import pallas as pl
from jax.experimental.pallas import tpu as pltpu

SINE_CONST = 30.0

# --- fast bounded-range sine --------------------------------------------------
_INV_PI = 0.3183098861837907
_PI_HI = 3.140625                 # exactly representable; k*PI_HI exact for small k
_PI_LO = 9.676535897932e-04       # pi - PI_HI (Cody-Waite low word)


def _fast_sin(x):
    """sin(x) for moderately bounded |x| (here |x| < ~50).

    Single-step Cody-Waite range reduction x = k*pi + r, r in [-pi/2, pi/2],
    sign flip on parity of k, then an odd degree-9 (Taylor) polynomial.
    Max abs error ~4e-6 — far below the model tolerance.
    """
    k = jnp.floor(x * _INV_PI + 0.5)
    r = x - k * _PI_HI
    r = r - k * _PI_LO
    # sin(r + k*pi) = (-1)^k sin(r); polynomial is odd, so flip r instead.
    odd = (k.astype(jnp.int32) & 1).astype(x.dtype)
    r = r * (1.0 - 2.0 * odd)
    s = r * r
    p = -1.0 / 5040.0 + s * (1.0 / 362880.0)
    p = 1.0 / 120.0 + s * p
    p = -1.0 / 6.0 + s * p
    p = 1.0 + s * p
    return r * p


# --- kernel -------------------------------------------------------------------
def siren_kernel(x_ref, w0s_ref, b0s_ref, whs_ref, bhs_ref, wl_ref, bl_ref,
                 o_ref, *, n_blocks):
    x = x_ref[...]                                         # (tm, dim), points on sublanes

    # First layer: (hidden, dim) x (tm, dim)^T -> (hidden, tm).
    # Activations land with points on the 128-lane axis (lane-dense sine work).
    # 30x scale is already folded into w0s / b0s.
    h = jax.lax.dot_general(
        w0s_ref[...], x, (((1,), (1,)), ((), ())),
        preferred_element_type=jnp.float32)
    h = _fast_sin(h + b0s_ref[...])

    # Hidden blocks (unrolled; n_blocks is tiny).
    # TODO(synk): switch to lax.fori_loop with dynamic whs_ref[l] if n_blocks grows large.
    for l in range(n_blocks):
        h = jnp.dot(whs_ref[l], h, preferred_element_type=jnp.float32)
        h = _fast_sin(h + bhs_ref[l])

    # Final layer emitted directly in the natural (points, out_dim) layout:
    # contract h's hidden axis (axis 0) against Wl's input axis (axis 0).
    out = jax.lax.dot_general(
        h, wl_ref[...], (((0,), (0,)), ((), ())),
        preferred_element_type=jnp.float32)
    o_ref[...] = (out + bl_ref[...]).astype(o_ref.dtype)


# --- param prep (one-time; NOT per forward) ------------------------------------
def prepare_kernel_params(params, sine_const=SINE_CONST):
    """Transpose sine-layer weights to (out_features, in_features) for the
    (hidden, tm) activation layout and fold the 30x sine scale in."""
    w0, b0, wh, bh, wl, bl = params
    w0s = (sine_const * w0).T                               # (hidden, dim)
    b0s = (sine_const * b0).reshape(-1, 1)                  # (hidden, 1)
    whs = jnp.transpose(sine_const * wh, (0, 2, 1))         # (n_blocks, hidden, hidden)
    bhs = (sine_const * bh).reshape(bh.shape[0], -1, 1)     # (n_blocks, hidden, 1)
    wl_ = wl                                                # (hidden, out_dim), as-is
    bl_ = bl.reshape(1, -1)                                 # (1, out_dim)
    return w0s, b0s, whs, bhs, wl_, bl_


# --- wrapper -------------------------------------------------------------------
def siren_forward(x, kparams, *, tm_max=1024):
    """x: (bs, npoints, dim) float32 -> (bs, npoints, out_dim).
    kparams: output of prepare_kernel_params()."""
    w0s, b0s, whs, bhs, wl, bl = kparams
    bs, npts, dim = x.shape
    hidden = w0s.shape[0]
    out_dim = wl.shape[1]
    n_blocks = whs.shape[0]

    M = bs * npts
    x2 = x.reshape(M, dim)                    # no-copy reshape, no transpose, no pad

    # Tile size: one full tile for small M (best on 1-TC v5e/v6e); otherwise a
    # large multiple of 128 (amortizes per-step overhead, many steps for v7x).
    if M <= tm_max:
        tm = M                                # block == full dim -> always legal
    else:
        tm = max(128, (tm_max // 128) * 128)
    grid = (pl.cdiv(M, tm),)                  # partial last tile handled by Pallas

    kernel = functools.partial(siren_kernel, n_blocks=n_blocks)

    out = pl.pallas_call(
        kernel,
        out_shape=jax.ShapeDtypeStruct((M, out_dim), x.dtype),
        grid_spec=pl.GridSpec(
            grid=grid,
            in_specs=[
                pl.BlockSpec((tm, dim), lambda i: (i, 0)),                      # x tile
                pl.BlockSpec((hidden, dim), lambda i: (0, 0)),                  # 30*W0^T
                pl.BlockSpec((hidden, 1), lambda i: (0, 0)),                    # 30*b0
                pl.BlockSpec((n_blocks, hidden, hidden), lambda i: (0, 0, 0)),  # 30*Wh^T
                pl.BlockSpec((n_blocks, hidden, 1), lambda i: (0, 0, 0)),       # 30*bh
                pl.BlockSpec((hidden, out_dim), lambda i: (0, 0)),              # Wl
                pl.BlockSpec((1, out_dim), lambda i: (0, 0)),                   # bl
            ],
            out_specs=pl.BlockSpec((tm, out_dim), lambda i: (i, 0)),            # (M, out_dim)
        ),
        compiler_params=pltpu.CompilerParams(
            dimension_semantics=("parallel",),
            vmem_limit_bytes=32 * 1024 * 1024),
    )(x2, w0s, b0s, whs, bhs, wl, bl)

    return out.reshape(bs, npts, out_dim)


# --- init & reference -----------------------------------------------------------
def init_params(key, dim, hidden, out_dim, n_blocks):
    """Deterministic init mirroring the PyTorch module's scheme.

    Weights stored as (in_features, out_features) so the reference computes
    y = x @ W + b (equivalent to PyTorch's x @ W_torch.T + b).
    - first layer weight ~ U(-1/in, 1/in)             (first_layer_sine_init)
    - other weights      ~ U(-sqrt(6/in)/30, +...)    (sine_init)
    - biases             ~ U(-1/sqrt(in), 1/sqrt(in)) (nn.Linear default)
    """
    ks = jax.random.split(key, 2 * (n_blocks + 2))
    ki = iter(range(len(ks)))

    def uni(k, shape, bound):
        return jax.random.uniform(k, shape, jnp.float32, -bound, bound)

    w0 = uni(ks[next(ki)], (dim, hidden), 1.0 / dim)
    b0 = uni(ks[next(ki)], (1, hidden), 1.0 / jnp.sqrt(dim))
    wh_list, bh_list = [], []
    sine_bound = (6.0 / hidden) ** 0.5 / 30.0
    for _ in range(n_blocks):
        wh_list.append(uni(ks[next(ki)], (hidden, hidden), sine_bound))
        bh_list.append(uni(ks[next(ki)], (1, hidden), 1.0 / jnp.sqrt(hidden)))
    wh = jnp.stack(wh_list, axis=0)
    bh = jnp.stack(bh_list, axis=0)
    wl = uni(ks[next(ki)], (hidden, out_dim), sine_bound)
    bl = uni(ks[next(ki)], (1, out_dim), 1.0 / jnp.sqrt(hidden))
    return w0, b0, wh, bh, wl, bl


def siren_ref(x, params):
    """Pure-JAX reference (original, unfolded params)."""
    w0, b0, wh, bh, wl, bl = params
    h = jnp.sin(SINE_CONST * (x @ w0 + b0))
    for l in range(wh.shape[0]):
        h = jnp.sin(SINE_CONST * (h @ wh[l] + bh[l]))
    return h @ wl + bl


if __name__ == "__main__":
    # Small configuration consistent with the module: dim=3 coords, out_dim=3,
    # hidden_size=32, n_blocks=2 -> (n_blocks+2) Linear layers total.
    bs, npts, dim = 2, 256, 3
    hidden, out_dim, n_blocks = 32, 3, 2

    key = jax.random.PRNGKey(0)
    kx, kp = jax.random.split(key)
    x = jax.random.uniform(kx, (bs, npts, dim), jnp.float32, -1.0, 1.0)
    params = init_params(kp, dim, hidden, out_dim, n_blocks)
    kparams = prepare_kernel_params(params)   # one-time fold/transpose

    fwd = jax.jit(lambda xx, kp_: siren_forward(xx, kp_))
    out = fwd(x, kparams)
    out = jax.block_until_ready(out)

    ref = siren_ref(x, params)
    assert out.shape == (bs, npts, out_dim)
    # sin(30*x) amplifies tiny numeric differences across layers; 5e-4 is a
    # comfortable bound for the ~4e-6 polynomial error + matmul reordering.
    assert jnp.allclose(out, ref, atol=5e-4, rtol=5e-4), "mismatch vs reference"

    print("KERNEL_OK")
</pallas_src>

<mosaic_0001>
module attributes {stable_mosaic.version = 11 : i64} {
  func.func @siren_kernel(%arg0: i32, %arg1: memref<512x3xf32, #tpu.memory_space<vmem>>, %arg2: memref<32x3xf32, #tpu.memory_space<vmem>>, %arg3: memref<32x1xf32, #tpu.memory_space<vmem>>, %arg4: memref<2x32x32xf32, #tpu.memory_space<vmem>>, %arg5: memref<2x32x1xf32, #tpu.memory_space<vmem>>, %arg6: memref<32x3xf32, #tpu.memory_space<vmem>>, %arg7: memref<1x3xf32, #tpu.memory_space<vmem>>, %arg8: memref<512x3xf32, #tpu.memory_space<vmem>>) attributes {dimension_semantics = [#tpu.dimension_semantics<parallel>], iteration_bounds = array<i64: 1>, scalar_prefetch = 0 : i64, scratch_operands = 0 : i64, tpu.core_type = #tpu.core_type<tc>, window_params = [{transform_indices = @transform_0, window_bounds = array<i64: 512, 3>}, {pipeline_mode = #tpu.pipeline_mode<synchronous>, transform_indices = @transform_1, window_bounds = array<i64: 32, 3>}, {pipeline_mode = #tpu.pipeline_mode<synchronous>, transform_indices = @transform_2, window_bounds = array<i64: 32, 1>}, {pipeline_mode = #tpu.pipeline_mode<synchronous>, transform_indices = @transform_3, window_bounds = array<i64: 2, 32, 32>}, {pipeline_mode = #tpu.pipeline_mode<synchronous>, transform_indices = @transform_4, window_bounds = array<i64: 2, 32, 1>}, {pipeline_mode = #tpu.pipeline_mode<synchronous>, transform_indices = @transform_5, window_bounds = array<i64: 32, 3>}, {pipeline_mode = #tpu.pipeline_mode<synchronous>, transform_indices = @transform_6, window_bounds = array<i64: 1, 3>}, {transform_indices = @transform_7, window_bounds = array<i64: 512, 3>}]} {
    %c0 = arith.constant 0 : index
    %c0_0 = arith.constant 0 : index
    %0 = vector.load %arg1[%c0, %c0_0] : memref<512x3xf32, #tpu.memory_space<vmem>>, vector<512x3xf32>
    %c0_1 = arith.constant 0 : index
    %c0_2 = arith.constant 0 : index
    %1 = vector.load %arg2[%c0_1, %c0_2] : memref<32x3xf32, #tpu.memory_space<vmem>>, vector<32x3xf32>
    %cst = arith.constant dense<0.000000e+00> : vector<32x512xf32>
    %2 = tpu.matmul %1, %0, %cst {dimension_numbers = #tpu.dot_dimension_numbers<[1], [1], [0], [0], [0, 0, 1, 0], [], []>} : vector<32x3xf32>, vector<512x3xf32>, vector<32x512xf32> -> vector<32x512xf32>
    %c0_3 = arith.constant 0 : index
    %c0_4 = arith.constant 0 : index
    %3 = vector.load %arg3[%c0_3, %c0_4] : memref<32x1xf32, #tpu.memory_space<vmem>>, vector<32x1xf32>
    %4 = vector.broadcast %3 : vector<32x1xf32> to vector<32x512xf32>
    %5 = arith.addf %2, %4 : vector<32x512xf32>
    %cst_5 = arith.constant 0.318309873 : f32
    %6 = vector.broadcast %cst_5 : f32 to vector<32x512xf32>
    %7 = arith.mulf %5, %6 : vector<32x512xf32>
    %cst_6 = arith.constant 5.000000e-01 : f32
    %8 = vector.broadcast %cst_6 : f32 to vector<32x512xf32>
    %9 = arith.addf %7, %8 : vector<32x512xf32>
    %10 = math.floor %9 : vector<32x512xf32>
    %cst_7 = arith.constant 3.140625 : f32
    %11 = vector.broadcast %cst_7 : f32 to vector<32x512xf32>
    %12 = arith.mulf %10, %11 : vector<32x512xf32>
    %13 = arith.subf %5, %12 : vector<32x512xf32>
    %cst_8 = arith.constant 9.67653584E-4 : f32
    %14 = vector.broadcast %cst_8 : f32 to vector<32x512xf32>
    %15 = arith.mulf %10, %14 : vector<32x512xf32>
    %16 = arith.subf %13, %15 : vector<32x512xf32>
    %17 = arith.fptosi %10 : vector<32x512xf32> to vector<32x512xi32>
    %c1_i32 = arith.constant 1 : i32
    %18 = vector.broadcast %c1_i32 : i32 to vector<32x512xi32>
    %19 = arith.andi %17, %18 : vector<32x512xi32>
    %20 = arith.sitofp %19 : vector<32x512xi32> to vector<32x512xf32>
    %cst_9 = arith.constant 2.000000e+00 : f32
    %21 = vector.broadcast %cst_9 : f32 to vector<32x512xf32>
    %22 = arith.mulf %21, %20 : vector<32x512xf32>
    %cst_10 = arith.constant 1.000000e+00 : f32
    %23 = vector.broadcast %cst_10 : f32 to vector<32x512xf32>
    %24 = arith.subf %23, %22 : vector<32x512xf32>
    %25 = arith.mulf %16, %24 : vector<32x512xf32>
    %26 = arith.mulf %25, %25 : vector<32x512xf32>
    %cst_11 = arith.constant 2.75573188E-6 : f32
    %27 = vector.broadcast %cst_11 : f32 to vector<32x512xf32>
    %28 = arith.mulf %26, %27 : vector<32x512xf32>
    %cst_12 = arith.constant -1.98412701E-4 : f32
    %29 = vector.broadcast %cst_12 : f32 to vector<32x512xf32>
    %30 = arith.addf %29, %28 : vector<32x512xf32>
    %31 = arith.mulf %26, %30 : vector<32x512xf32>
    %cst_13 = arith.constant 0.00833333377 : f32
    %32 = vector.broadcast %cst_13 : f32 to vector<32x512xf32>
    %33 = arith.addf %32, %31 : vector<32x512xf32>
    %34 = arith.mulf %26, %33 : vector<32x512xf32>
    %cst_14 = arith.constant -0.166666672 : f32
    %35 = vector.broadcast %cst_14 : f32 to vector<32x512xf32>
    %36 = arith.addf %35, %34 : vector<32x512xf32>
    %37 = arith.mulf %26, %36 : vector<32x512xf32>
    %cst_15 = arith.constant 1.000000e+00 : f32
    %38 = vector.broadcast %cst_15 : f32 to vector<32x512xf32>
    %39 = arith.addf %38, %37 : vector<32x512xf32>
    %40 = arith.mulf %25, %39 : vector<32x512xf32>
    %c0_16 = arith.constant 0 : index
    %c0_17 = arith.constant 0 : index
    %c0_18 = arith.constant 0 : index
    %41 = vector.load %arg4[%c0_16, %c0_17, %c0_18] : memref<2x32x32xf32, #tpu.memory_space<vmem>>, vector<1x32x32xf32>
    %42 = vector.shape_cast %41 : vector<1x32x32xf32> to vector<32x32xf32>
    %cst_19 = arith.constant dense<0.000000e+00> : vector<32x512xf32>
    %43 = tpu.matmul %42, %40, %cst_19 {dimension_numbers = #tpu.dot_dimension_numbers<[1], [0], [0], [1], [0, 0, 1, 1], [], []>} : vector<32x32xf32>, vector<32x512xf32>, vector<32x512xf32> -> vector<32x512xf32>
    %c0_20 = arith.constant 0 : index
    %c0_21 = arith.constant 0 : index
    %c0_22 = arith.constant 0 : index
    %44 = vector.load %arg5[%c0_20, %c0_21, %c0_22] : memref<2x32x1xf32, #tpu.memory_space<vmem>>, vector<1x32x1xf32>
    %45 = vector.shape_cast %44 : vector<1x32x1xf32> to vector<32x1xf32>
    %46 = vector.broadcast %45 : vector<32x1xf32> to vector<32x512xf32>
    %47 = arith.addf %43, %46 : vector<32x512xf32>
    %cst_23 = arith.constant 0.318309873 : f32
    %48 = vector.broadcast %cst_23 : f32 to vector<32x512xf32>
    %49 = arith.mulf %47, %48 : vector<32x512xf32>
    %cst_24 = arith.constant 5.000000e-01 : f32
    %50 = vector.broadcast %cst_24 : f32 to vector<32x512xf32>
    %51 = arith.addf %49, %50 : vector<32x512xf32>
    %52 = math.floor %51 : vector<32x512xf32>
    %cst_25 = arith.constant 3.140625 : f32
    %53 = vector.broadcast %cst_25 : f32 to vector<32x512xf32>
    %54 = arith.mulf %52, %53 : vector<32x512xf32>
    %55 = arith.subf %47, %54 : vector<32x512xf32>
    %cst_26 = arith.constant 9.67653584E-4 : f32
    %56 = vector.broadcast %cst_26 : f32 to vector<32x512xf32>
    %57 = arith.mulf %52, %56 : vector<32x512xf32>
    %58 = arith.subf %55, %57 : vector<32x512xf32>
    %59 = arith.fptosi %52 : vector<32x512xf32> to vector<32x512xi32>
    %c1_i32_27 = arith.constant 1 : i32
    %60 = vector.broadcast %c1_i32_27 : i32 to vector<32x512xi32>
    %61 = arith.andi %59, %60 : vector<32x512xi32>
    %62 = arith.sitofp %61 : vector<32x512xi32> to vector<32x512xf32>
    %cst_28 = arith.constant 2.000000e+00 : f32
    %63 = vector.broadcast %cst_28 : f32 to vector<32x512xf32>
    %64 = arith.mulf %63, %62 : vector<32x512xf32>
    %cst_29 = arith.constant 1.000000e+00 : f32
    %65 = vector.broadcast %cst_29 : f32 to vector<32x512xf32>
    %66 = arith.subf %65, %64 : vector<32x512xf32>
    %67 = arith.mulf %58, %66 : vector<32x512xf32>
    %68 = arith.mulf %67, %67 : vector<32x512xf32>
    %cst_30 = arith.constant 2.75573188E-6 : f32
    %69 = vector.broadcast %cst_30 : f32 to vector<32x512xf32>
    %70 = arith.mulf %68, %69 : vector<32x512xf32>
    %cst_31 = arith.constant -1.98412701E-4 : f32
    %71 = vector.broadcast %cst_31 : f32 to vector<32x512xf32>
    %72 = arith.addf %71, %70 : vector<32x512xf32>
    %73 = arith.mulf %68, %72 : vector<32x512xf32>
    %cst_32 = arith.constant 0.00833333377 : f32
    %74 = vector.broadcast %cst_32 : f32 to vector<32x512xf32>
    %75 = arith.addf %74, %73 : vector<32x512xf32>
    %76 = arith.mulf %68, %75 : vector<32x512xf32>
    %cst_33 = arith.constant -0.166666672 : f32
    %77 = vector.broadcast %cst_33 : f32 to vector<32x512xf32>
    %78 = arith.addf %77, %76 : vector<32x512xf32>
    %79 = arith.mulf %68, %78 : vector<32x512xf32>
    %cst_34 = arith.constant 1.000000e+00 : f32
    %80 = vector.broadcast %cst_34 : f32 to vector<32x512xf32>
    %81 = arith.addf %80, %79 : vector<32x512xf32>
    %82 = arith.mulf %67, %81 : vector<32x512xf32>
    %c1 = arith.constant 1 : index
    %c0_35 = arith.constant 0 : index
    %c0_36 = arith.constant 0 : index
    %83 = vector.load %arg4[%c1, %c0_35, %c0_36] : memref<2x32x32xf32, #tpu.memory_space<vmem>>, vector<1x32x32xf32>
    %84 = vector.shape_cast %83 : vector<1x32x32xf32> to vector<32x32xf32>
    %cst_37 = arith.constant dense<0.000000e+00> : vector<32x512xf32>
    %85 = tpu.matmul %84, %82, %cst_37 {dimension_numbers = #tpu.dot_dimension_numbers<[1], [0], [0], [1], [0, 0, 1, 1], [], []>} : vector<32x32xf32>, vector<32x512xf32>, vector<32x512xf32> -> vector<32x512xf32>
    %c1_38 = arith.constant 1 : index
    %c0_39 = arith.constant 0 : index
    %c0_40 = arith.constant 0 : index
    %86 = vector.load %arg5[%c1_38, %c0_39, %c0_40] : memref<2x32x1xf32, #tpu.memory_space<vmem>>, vector<1x32x1xf32>
    %87 = vector.shape_cast %86 : vector<1x32x1xf32> to vector<32x1xf32>
    %88 = vector.broadcast %87 : vector<32x1xf32> to vector<32x512xf32>
    %89 = arith.addf %85, %88 : vector<32x512xf32>
    %cst_41 = arith.constant 0.318309873 : f32
    %90 = vector.broadcast %cst_41 : f32 to vector<32x512xf32>
    %91 = arith.mulf %89, %90 : vector<32x512xf32>
    %cst_42 = arith.constant 5.000000e-01 : f32
    %92 = vector.broadcast %cst_42 : f32 to vector<32x512xf32>
    %93 = arith.addf %91, %92 : vector<32x512xf32>
    %94 = math.floor %93 : vector<32x512xf32>
    %cst_43 = arith.constant 3.140625 : f32
    %95 = vector.broadcast %cst_43 : f32 to vector<32x512xf32>
    %96 = arith.mulf %94, %95 : vector<32x512xf32>
    %97 = arith.subf %89, %96 : vector<32x512xf32>
    %cst_44 = arith.constant 9.67653584E-4 : f32
    %98 = vector.broadcast %cst_44 : f32 to vector<32x512xf32>
    %99 = arith.mulf %94, %98 : vector<32x512xf32>
    %100 = arith.subf %97, %99 : vector<32x512xf32>
    %101 = arith.fptosi %94 : vector<32x512xf32> to vector<32x512xi32>
    %c1_i32_45 = arith.constant 1 : i32
    %102 = vector.broadcast %c1_i32_45 : i32 to vector<32x512xi32>
    %103 = arith.andi %101, %102 : vector<32x512xi32>
    %104 = arith.sitofp %103 : vector<32x512xi32> to vector<32x512xf32>
    %cst_46 = arith.constant 2.000000e+00 : f32
    %105 = vector.broadcast %cst_46 : f32 to vector<32x512xf32>
    %106 = arith.mulf %105, %104 : vector<32x512xf32>
    %cst_47 = arith.constant 1.000000e+00 : f32
    %107 = vector.broadcast %cst_47 : f32 to vector<32x512xf32>
    %108 = arith.subf %107, %106 : vector<32x512xf32>
    %109 = arith.mulf %100, %108 : vector<32x512xf32>
    %110 = arith.mulf %109, %109 : vector<32x512xf32>
    %cst_48 = arith.constant 2.75573188E-6 : f32
    %111 = vector.broadcast %cst_48 : f32 to vector<32x512xf32>
    %112 = arith.mulf %110, %111 : vector<32x512xf32>
    %cst_49 = arith.constant -1.98412701E-4 : f32
    %113 = vector.broadcast %cst_49 : f32 to vector<32x512xf32>
    %114 = arith.addf %113, %112 : vector<32x512xf32>
    %115 = arith.mulf %110, %114 : vector<32x512xf32>
    %cst_50 = arith.constant 0.00833333377 : f32
    %116 = vector.broadcast %cst_50 : f32 to vector<32x512xf32>
    %117 = arith.addf %116, %115 : vector<32x512xf32>
    %118 = arith.mulf %110, %117 : vector<32x512xf32>
    %cst_51 = arith.constant -0.166666672 : f32
    %119 = vector.broadcast %cst_51 : f32 to vector<32x512xf32>
    %120 = arith.addf %119, %118 : vector<32x512xf32>
    %121 = arith.mulf %110, %120 : vector<32x512xf32>
    %cst_52 = arith.constant 1.000000e+00 : f32
    %122 = vector.broadcast %cst_52 : f32 to vector<32x512xf32>
    %123 = arith.addf %122, %121 : vector<32x512xf32>
    %124 = arith.mulf %109, %123 : vector<32x512xf32>
    %c0_53 = arith.constant 0 : index
    %c0_54 = arith.constant 0 : index
    %125 = vector.load %arg6[%c0_53, %c0_54] : memref<32x3xf32, #tpu.memory_space<vmem>>, vector<32x3xf32>
    %cst_55 = arith.constant dense<0.000000e+00> : vector<512x3xf32>
    %126 = tpu.matmul %124, %125, %cst_55 {dimension_numbers = #tpu.dot_dimension_numbers<[0], [0], [1], [1], [0, 1, 1, 1], [], []>} : vector<32x512xf32>, vector<32x3xf32>, vector<512x3xf32> -> vector<512x3xf32>
    %c0_56 = arith.constant 0 : index
    %c0_57 = arith.constant 0 : index
    %127 = vector.load %arg7[%c0_56, %c0_57] : memref<1x3xf32, #tpu.memory_space<vmem>>, vector<1x3xf32>
    %128 = vector.broadcast %127 : vector<1x3xf32> to vector<512x3xf32>
    %129 = arith.addf %126, %128 : vector<512x3xf32>
    %c0_58 = arith.constant 0 : index
    %c0_59 = arith.constant 0 : index
    %130 = vector.load %arg8[%c0_58, %c0_59] : memref<512x3xf32, #tpu.memory_space<vmem>>, vector<512x3xf32>
    tpu.vector_store %arg8[%c0_58, %c0_59], %129 {strides = array<i32>} : memref<512x3xf32, #tpu.memory_space<vmem>>, vector<512x3xf32>,
    return
  }
  func.func @transform_0(%arg0: i32) -> (i32, i32) {
    %c0_i32 = arith.constant 0 : i32
    %c0_i32_0 = arith.constant 0 : i32
    return %arg0, %c0_i32 : i32, i32
  }
  func.func @transform_1(%arg0: i32) -> (i32, i32) {
    %c0_i32 = arith.constant 0 : i32
    %c0_i32_0 = arith.constant 0 : i32
    %c0_i32_1 = arith.constant 0 : i32
    return %c0_i32, %c0_i32_0 : i32, i32
  }
  func.func @transform_2(%arg0: i32) -> (i32, i32) {
    %c0_i32 = arith.constant 0 : i32
    %c0_i32_0 = arith.constant 0 : i32
    %c0_i32_1 = arith.constant 0 : i32
    return %c0_i32, %c0_i32_0 : i32, i32
  }
  func.func @transform_3(%arg0: i32) -> (i32, i32, i32) {
    %c0_i32 = arith.constant 0 : i32
    %c0_i32_0 = arith.constant 0 : i32
    %c0_i32_1 = arith.constant 0 : i32
    %c0_i32_2 = arith.constant 0 : i32
    return %c0_i32, %c0_i32_0, %c0_i32_1 : i32, i32, i32
  }
  func.func @transform_4(%arg0: i32) -> (i32, i32, i32) {
    %c0_i32 = arith.constant 0 : i32
    %c0_i32_0 = arith.constant 0 : i32
    %c0_i32_1 = arith.constant 0 : i32
    %c0_i32_2 = arith.constant 0 : i32
    return %c0_i32, %c0_i32_0, %c0_i32_1 : i32, i32, i32
  }
  func.func @transform_5(%arg0: i32) -> (i32, i32) {
    %c0_i32 = arith.constant 0 : i32
    %c0_i32_0 = arith.constant 0 : i32
    %c0_i32_1 = arith.constant 0 : i32
    return %c0_i32, %c0_i32_0 : i32, i32
  }
  func.func @transform_6(%arg0: i32) -> (i32, i32) {
    %c0_i32 = arith.constant 0 : i32
    %c0_i32_0 = arith.constant 0 : i32
    %c0_i32_1 = arith.constant 0 : i32
    return %c0_i32, %c0_i32_0 : i32, i32
  }
  func.func @transform_7(%arg0: i32) -> (i32, i32) {
    %c0_i32 = arith.constant 0 : i32
    %c0_i32_0 = arith.constant 0 : i32
    return %arg0, %c0_i32 : i32, i32
  }
}

</mosaic_0001>

<llo_original>
// kernel: _lambda_.1
$region0: #{_lambda_.1}
  #allocation0 [shape = 'u32[]', space=smem, size = 0x4, offset = 0x4, fixed_abs, tag = 'smem constant byte address 0x4 - core index']
  #allocation1 [shape = 'u32[144,128]{1,0:T(1,128)}', space=vmem, size = 0x12000, scoped, tag = 'internal scratch']
  %s0 = inlined_call_operand.vmem [shape: f32[512,3], index: 0, kind: input, shape index: {}]
  %s1 = inlined_call_operand.vmem [shape: f32[32,3], index: 1, kind: input, shape index: {}]
  %s2 = inlined_call_operand.vmem [shape: f32[32,1], index: 2, kind: input, shape index: {}]
  %s3 = inlined_call_operand.vmem [shape: f32[2,32,32], index: 3, kind: input, shape index: {}]
  %s4 = inlined_call_operand.vmem [shape: f32[2,32,1], index: 4, kind: input, shape index: {}]
  %s5 = inlined_call_operand.vmem [shape: f32[32,3], index: 5, kind: input, shape index: {}]
  %s6 = inlined_call_operand.vmem [shape: f32[1,3], index: 6, kind: input, shape index: {}]
  %s7 = inlined_call_operand.vmem [shape: f32[512,3], index: 7, kind: output, shape index: {}]
  %s8 = sld [smem:[#allocation0]]
  $region38: #{_lambda_.1} parent=0
    _
  %s10 = ssub.s32 1, %s8
  %s11 = scalar_select 0, %s10, %s8
  // Predicated region
  $region2: #{_lambda_.1} parent=0 // pred_check
    _
  $region3: #{_lambda_.1} parent=0 // pred_check_branch
    %13 = sbr.rel (0) target = $region5
  $region4: #{_lambda_.1} parent=0 // pred_region
    _
  $region5: #{_lambda_.1} parent=0 // pred_fallthru
    _
  // Predicated region
  $region6: #{_lambda_.1} parent=0 // pred_check
    _
  $region7: #{_lambda_.1} parent=0 // pred_check_branch
    %15 = sbr.rel (0) target = $region9
  $region8: #{_lambda_.1} parent=0 // pred_region
    _
  $region9: #{_lambda_.1} parent=0 // pred_fallthru
    _
  // Predicated region
  $region10: #{_lambda_.1} parent=0 // pred_check
    _
  $region11: #{_lambda_.1} parent=0 // pred_check_branch
    %17 = sbr.rel (0) target = $region13
  $region12: #{_lambda_.1} parent=0 // pred_region
    _
  $region13: #{_lambda_.1} parent=0 // pred_fallthru
    _
  // Predicated region
  $region14: #{_lambda_.1} parent=0 // pred_check
    _
  $region15: #{_lambda_.1} parent=0 // pred_check_branch
    %19 = sbr.rel (0) target = $region17
  $region16: #{_lambda_.1} parent=0 // pred_region
    _
  $region17: #{_lambda_.1} parent=0 // pred_fallthru
    _
  // Predicated region
  $region18: #{_lambda_.1} parent=0 // pred_check
    _
  $region19: #{_lambda_.1} parent=0 // pred_check_branch
    %21 = sbr.rel (0) target = $region21
  $region20: #{_lambda_.1} parent=0 // pred_region
    _
  $region21: #{_lambda_.1} parent=0 // pred_fallthru
    _
  // Predicated region
  $region22: #{_lambda_.1} parent=0 // pred_check
    _
  $region23: #{_lambda_.1} parent=0 // pred_check_branch
    %23 = sbr.rel (0) target = $region25
  $region24: #{_lambda_.1} parent=0 // pred_region
    _
  $region25: #{_lambda_.1} parent=0 // pred_fallthru
    _
  // Predicated region
  $region26: #{_lambda_.1} parent=0 // pred_check
    _
  $region27: #{_lambda_.1} parent=0 // pred_check_branch
    %25 = sbr.rel (0) target = $region29
  $region28: #{_lambda_.1} parent=0 // pred_region
    _
  $region29: #{_lambda_.1} parent=0 // pred_fallthru
    _
  %v26 = vld [vmem:[%s0] sm:$0xff]
  %v27 = vld [vmem:[%s0 + $0x8] sm:$0xff]
  %v28 = vld [vmem:[%s0 + $0x10] sm:$0xff]
  %v29 = vld [vmem:[%s0 + $0x18] sm:$0xff]
  %v30 = vld [vmem:[%s0 + $0x20] sm:$0xff]
  %v31 = vld [vmem:[%s0 + $0x28] sm:$0xff]
  %v32 = vld [vmem:[%s0 + $0x30] sm:$0xff]
  %v33 = vld [vmem:[%s0 + $0x38] sm:$0xff]
  %v34 = vld [vmem:[%s0 + $0x40] sm:$0xff]
  %v35 = vld [vmem:[%s0 + $0x48] sm:$0xff]
  %v36 = vld [vmem:[%s0 + $0x50] sm:$0xff]
  %v37 = vld [vmem:[%s0 + $0x58] sm:$0xff]
  %v38 = vld [vmem:[%s0 + $0x60] sm:$0xff]
  %v39 = vld [vmem:[%s0 + $0x68] sm:$0xff]
  %v40 = vld [vmem:[%s0 + $0x70] sm:$0xff]
  %v41 = vld [vmem:[%s0 + $0x78] sm:$0xff]
  %v42 = vld [vmem:[%s0 + $0x80] sm:$0xff]
  %v43 = vld [vmem:[%s0 + $0x88] sm:$0xff]
  %v44 = vld [vmem:[%s0 + $0x90] sm:$0xff]
  %v45 = vld [vmem:[%s0 + $0x98] sm:$0xff]
  %v46 = vld [vmem:[%s0 + $0xa0] sm:$0xff]
  %v47 = vld [vmem:[%s0 + $0xa8] sm:$0xff]
  %v48 = vld [vmem:[%s0 + $0xb0] sm:$0xff]
  %v49 = vld [vmem:[%s0 + $0xb8] sm:$0xff]
  %v50 = vld [vmem:[%s0 + $0xc0] sm:$0xff]
  %v51 = vld [vmem:[%s0 + $0xc8] sm:$0xff]
  %v52 = vld [vmem:[%s0 + $0xd0] sm:$0xff]
  %v53 = vld [vmem:[%s0 + $0xd8] sm:$0xff]
  %v54 = vld [vmem:[%s0 + $0xe0] sm:$0xff]
  %v55 = vld [vmem:[%s0 + $0xe8] sm:$0xff]
  %v56 = vld [vmem:[%s0 + $0xf0] sm:$0xff]
  %v57 = vld [vmem:[%s0 + $0xf8] sm:$0xff]
  %v58 = vld [vmem:[%s0 + $0x100] sm:$0xff]
  %v59 = vld [vmem:[%s0 + $0x108] sm:$0xff]
  %v60 = vld [vmem:[%s0 + $0x110] sm:$0xff]
  %v61 = vld [vmem:[%s0 + $0x118] sm:$0xff]
  %v62 = vld [vmem:[%s0 + $0x120] sm:$0xff]
  %v63 = vld [vmem:[%s0 + $0x128] sm:$0xff]
  %v64 = vld [vmem:[%s0 + $0x130] sm:$0xff]
  %v65 = vld [vmem:[%s0 + $0x138] sm:$0xff]
  %v66 = vld [vmem:[%s0 + $0x140] sm:$0xff]
  %v67 = vld [vmem:[%s0 + $0x148] sm:$0xff]
  %v68 = vld [vmem:[%s0 + $0x150] sm:$0xff]
  %v69 = vld [vmem:[%s0 + $0x158] sm:$0xff]
  %v70 = vld [vmem:[%s0 + $0x160] sm:$0xff]
  %v71 = vld [vmem:[%s0 + $0x168] sm:$0xff]
  %v72 = vld [vmem:[%s0 + $0x170] sm:$0xff]
  %v73 = vld [vmem:[%s0 + $0x178] sm:$0xff]
  %v74 = vld [vmem:[%s0 + $0x180] sm:$0xff]
  %v75 = vld [vmem:[%s0 + $0x188] sm:$0xff]
  %v76 = vld [vmem:[%s0 + $0x190] sm:$0xff]
  %v77 = vld [vmem:[%s0 + $0x198] sm:$0xff]
  %v78 = vld [vmem:[%s0 + $0x1a0] sm:$0xff]
  %v79 = vld [vmem:[%s0 + $0x1a8] sm:$0xff]
  %v80 = vld [vmem:[%s0 + $0x1b0] sm:$0xff]
  %v81 = vld [vmem:[%s0 + $0x1b8] sm:$0xff]
  %v82 = vld [vmem:[%s0 + $0x1c0] sm:$0xff]
  %v83 = vld [vmem:[%s0 + $0x1c8] sm:$0xff]
  %v84 = vld [vmem:[%s0 + $0x1d0] sm:$0xff]
  %v85 = vld [vmem:[%s0 + $0x1d8] sm:$0xff]
  %v86 = vld [vmem:[%s0 + $0x1e0] sm:$0xff]
  %v87 = vld [vmem:[%s0 + $0x1e8] sm:$0xff]
  %v88 = vld [vmem:[%s0 + $0x1f0] sm:$0xff]
  %v89 = vld [vmem:[%s0 + $0x1f8] sm:$0xff]
  %v90 = vld [vmem:[%s1] sm:$0xff]
  %v91 = vld [vmem:[%s1 + $0x8] sm:$0xff]
  %v92 = vld [vmem:[%s1 + $0x10] sm:$0xff]
  %v93 = vld [vmem:[%s1 + $0x18] sm:$0xff]
  %v94 = vld [vmem:[%s2] sm:$0xff]
  %v95 = vld [vmem:[%s2 + $0x8] sm:$0xff]
  %v96 = vld [vmem:[%s2 + $0x10] sm:$0xff]
  %v97 = vld [vmem:[%s2 + $0x18] sm:$0xff]
  %99 = vset.pattern.permute.xlu0 0
  %100 = vperm.xlu0 %99, %v94
  %v101 = vpop.permute.xlu0 %100
  %104 = vset.pattern.permute.xlu0 0
  %105 = vperm.xlu0 %104, %v95
  %v106 = vpop.permute.xlu0 %105
  %109 = vset.pattern.permute.xlu0 0
  %110 = vperm.xlu0 %109, %v96
  %v111 = vpop.permute.xlu0 %110
  %114 = vset.pattern.permute.xlu0 0
  %115 = vperm.xlu0 %114, %v97
  %v116 = vpop.permute.xlu0 %115
  %vm118 = vcmask 23552
  %v120 = vsel %vm118, %v90, 0
  %v123 = vsel %vm118, %v91, 0
  %v126 = vsel %vm118, %v92, 0
  %v129 = vsel %vm118, %v93, 0
  %v132 = vsel %vm118, %v26, 0
  %v135 = vsel %vm118, %v27, 0
  %v138 = vsel %vm118, %v28, 0
  %v141 = vsel %vm118, %v29, 0
  %v144 = vsel %vm118, %v30, 0
  %v147 = vsel %vm118, %v31, 0
  %v150 = vsel %vm118, %v32, 0
  %v153 = vsel %vm118, %v33, 0
  %v156 = vsel %vm118, %v34, 0
  %v159 = vsel %vm118, %v35, 0
  %v162 = vsel %vm118, %v36, 0
  %v165 = vsel %vm118, %v37, 0
  %v168 = vsel %vm118, %v38, 0
  %v171 = vsel %vm118, %v39, 0
  %v174 = vsel %vm118, %v40, 0
  %v177 = vsel %vm118, %v41, 0
  %v180 = vsel %vm118, %v42, 0
  %v183 = vsel %vm118, %v43, 0
  %v186 = vsel %vm118, %v44, 0
  %v189 = vsel %vm118, %v45, 0
  %v192 = vsel %vm118, %v46, 0
  %v195 = vsel %vm118, %v47, 0
  %v198 = vsel %vm118, %v48, 0
  %v201 = vsel %vm118, %v49, 0
  %v204 = vsel %vm118, %v50, 0
  %v207 = vsel %vm118, %v51, 0
  %v210 = vsel %vm118, %v52, 0
  %v213 = vsel %vm118, %v53, 0
  %v216 = vsel %vm118, %v54, 0
  %v219 = vsel %vm118, %v55, 0
  %v222 = vsel %vm118, %v56, 0
  %v225 = vsel %vm118, %v57, 0
  %v228 = vsel %vm118, %v58, 0
  %v231 = vsel %vm118, %v59, 0
  %v234 = vsel %vm118, %v60, 0
  %v237 = vsel %vm118, %v61, 0
  %v240 = vsel %vm118, %v62, 0
  %v243 = vsel %vm118, %v63, 0
  %v246 = vsel %vm118, %v64, 0
  %v249 = vsel %vm118, %v65, 0
  %v252 = vsel %vm118, %v66, 0
  %v255 = vsel %vm118, %v67, 0
  %v258 = vsel %vm118, %v68, 0
  %v261 = vsel %vm118, %v69, 0
  %v264 = vsel %vm118, %v70, 0
  %v267 = vsel %vm118, %v71, 0
  %v270 = vsel %vm118, %v72, 0
  %v273 = vsel %vm118, %v73, 0
  %v276 = vsel %vm118, %v74, 0
  %v279 = vsel %vm118, %v75, 0
  %v282 = vsel %vm118, %v76, 0
  %v285 = vsel %vm118, %v77, 0
  %v288 = vsel %vm118, %v78, 0
  %v291 = vsel %vm118, %v79, 0
  %v294 = vsel %vm118, %v80, 0
  %v297 = vsel %vm118, %v81, 0
  %v300 = vsel %vm118, %v82, 0
  %v303 = vsel %vm118, %v83, 0
  %v306 = vsel %vm118, %v84, 0
  %v309 = vsel %vm118, %v85, 0
  %v312 = vsel %vm118, %v86, 0
  %v315 = vsel %vm118, %v87, 0
  %v318 = vsel %vm118, %v88, 0
  %v321 = vsel %vm118, %v89, 0
  %323 = vmatprep.subr.mxu0 0.0
  %324 = vmatpush1.xpose.msra.mxu0 %v132
  %325 = vmatprep.subr.mxu0 0.0
  %326 = vmatpush1.xpose.msra.mxu0 %v135
  %327 = vmatprep.subr.mxu0 0.0
  %328 = vmatpush1.xpose.msra.mxu0 %v138
  %329 = vmatprep.subr.mxu0 0.0
  %330 = vmatpush1.xpose.msra.mxu0 %v141
  %331 = vmatprep.subr.mxu0 0.0
  %332 = vmatpush1.xpose.msra.mxu0 %v144
  %333 = vmatprep.subr.mxu0 0.0
  %334 = vmatpush1.xpose.msra.mxu0 %v147
  %335 = vmatprep.subr.mxu0 0.0
  %336 = vmatpush1.xpose.msra.mxu0 %v150
  %337 = vmatprep.subr.mxu0 0.0
  %338 = vmatpush1.xpose.msra.mxu0 %v153
  %339 = vmatprep.subr.mxu0 0.0
  %340 = vmatpush1.xpose.msra.mxu0 %v156
  %341 = vmatprep.subr.mxu0 0.0
  %342 = vmatpush1.xpose.msra.mxu0 %v159
  %343 = vmatprep.subr.mxu0 0.0
  %344 = vmatpush1.xpose.msra.mxu0 %v162
  %345 = vmatprep.subr.mxu0 0.0
  %346 = vmatpush1.xpose.msra.mxu0 %v165
  %347 = vmatprep.subr.mxu0 0.0
  %348 = vmatpush1.xpose.msra.mxu0 %v168
  %349 = vmatprep.subr.mxu0 0.0
  %350 = vmatpush1.xpose.msra.mxu0 %v171
  %351 = vmatprep.subr.mxu0 0.0
  %352 = vmatpush1.xpose.msra.mxu0 %v174
  %353 = vmatprep.subr.mxu0 0.0
  %354 = vmatpush1.xpose.msra.mxu0 %v177
  %355 = vmatprep.subr.mxu0 0.0
  %356 = vmatpush1.xpose.msra.mxu0 %v180
  %357 = vmatprep.subr.mxu0 0.0
  %358 = vmatpush1.xpose.msra.mxu0 %v183
  %359 = vmatprep.subr.mxu0 0.0
  %360 = vmatpush1.xpose.msra.mxu0 %v186
  %361 = vmatprep.subr.mxu0 0.0
  %362 = vmatpush1.xpose.msra.mxu0 %v189
  %363 = vmatprep.subr.mxu0 0.0
  %364 = vmatpush1.xpose.msra.mxu0 %v192
  %365 = vmatprep.subr.mxu0 0.0
  %366 = vmatpush1.xpose.msra.mxu0 %v195
  %367 = vmatprep.subr.mxu0 0.0
  %368 = vmatpush1.xpose.msra.mxu0 %v198
  %369 = vmatprep.subr.mxu0 0.0
  %370 = vmatpush1.xpose.msra.mxu0 %v201
  %371 = vmatprep.subr.mxu0 0.0
  %372 = vmatpush1.xpose.msra.mxu0 %v204
  %373 = vmatprep.subr.mxu0 0.0
  %374 = vmatpush1.xpose.msra.mxu0 %v207
  %375 = vmatprep.subr.mxu0 0.0
  %376 = vmatpush1.xpose.msra.mxu0 %v210
  %377 = vmatprep.subr.mxu0 0.0
  %378 = vmatpush1.xpose.msra.mxu0 %v213
  %379 = vmatprep.subr.mxu0 0.0
  %380 = vmatpush1.xpose.msra.mxu0 %v216
  %381 = vmatprep.subr.mxu0 0.0
  %382 = vmatpush1.xpose.msra.mxu0 %v219
  %383 = vmatprep.subr.mxu0 0.0
  %384 = vmatpush1.xpose.msra.mxu0 %v222
  %385 = vmatprep.subr.mxu0 0.0
  %386 = vmatpush1.xpose.msra.mxu0 %v225
  %387 = vmatprep.mubr.f32.mxu0 0.0
  %388 = vmatmul.mubr.f32.gmra.mrb[0].mxu0 %v120
  %v389 = vpop.f32.mrb[0].mxu0
  %v390 = vadd.f32 %v101, %v389
  %v391 = vpop.f32.mrb[0].mxu0
  %v392 = vadd.f32 %v101, %v391
  %393 = vmatprep.mubr.f32.mxu0 0.0
  %394 = vmatmul.mubr.f32.gmra.mrb[0].mxu0 %v123
  %v395 = vpop.f32.mrb[0].mxu0
  %v396 = vadd.f32 %v106, %v395
  %v397 = vpop.f32.mrb[0].mxu0
  %v398 = vadd.f32 %v106, %v397
  %399 = vmatprep.mubr.f32.mxu0 0.0
  %400 = vmatmul.mubr.f32.gmra.mrb[0].mxu0 %v126
  %v401 = vpop.f32.mrb[0].mxu0
  %v402 = vadd.f32 %v111, %v401
  %v403 = vpop.f32.mrb[0].mxu0
  %v404 = vadd.f32 %v111, %v403
  %405 = vmatprep.mubr.f32.mxu0 0.0
  %406 = vmatmul.mubr.f32.gmra.mrb[0].mxu0 %v129
  %v407 = vpop.f32.mrb[0].mxu0
  %v408 = vadd.f32 %v116, %v407
  %v409 = vpop.f32.mrb[0].mxu0
  %v410 = vadd.f32 %v116, %v409
  %411 = vdwg.mxu0
  %412 = vmatprep.subr.mxu0 0.0
  %413 = vmatpush1.xpose.msra.mxu0 %v228
  %414 = vmatprep.subr.mxu0 0.0
  %415 = vmatpush1.xpose.msra.mxu0 %v231
  %416 = vmatprep.subr.mxu0 0.0
  %417 = vmatpush1.xpose.msra.mxu0 %v234
  %418 = vmatprep.subr.mxu0 0.0
  %419 = vmatpush1.xpose.msra.mxu0 %v237
  %420 = vmatprep.subr.mxu0 0.0
  %421 = vmatpush1.xpose.msra.mxu0 %v240
  %422 = vmatprep.subr.mxu0 0.0
  %423 = vmatpush1.xpose.msra.mxu0 %v243
  %424 = vmatprep.subr.mxu0 0.0
  %425 = vmatpush1.xpose.msra.mxu0 %v246
  %426 = vmatprep.subr.mxu0 0.0
  %427 = vmatpush1.xpose.msra.mxu0 %v249
  %428 = vmatprep.subr.mxu0 0.0
  %429 = vmatpush1.xpose.msra.mxu0 %v252
  %430 = vmatprep.subr.mxu0 0.0
  %431 = vmatpush1.xpose.msra.mxu0 %v255
  %432 = vmatprep.subr.mxu0 0.0
  %433 = vmatpush1.xpose.msra.mxu0 %v258
  %434 = vmatprep.subr.mxu0 0.0
  %435 = vmatpush1.xpose.msra.mxu0 %v261
  %436 = vmatprep.subr.mxu0 0.0
  %437 = vmatpush1.xpose.msra.mxu0 %v264
  %438 = vmatprep.subr.mxu0 0.0
  %439 = vmatpush1.xpose.msra.mxu0 %v267
  %440 = vmatprep.subr.mxu0 0.0
  %441 = vmatpush1.xpose.msra.mxu0 %v270
  %442 = vmatprep.subr.mxu0 0.0
  %443 = vmatpush1.xpose.msra.mxu0 %v273
  %444 = vmatprep.subr.mxu0 0.0
  %445 = vmatpush1.xpose.msra.mxu0 %v276
  %446 = vmatprep.subr.mxu0 0.0
  %447 = vmatpush1.xpose.msra.mxu0 %v279
  %448 = vmatprep.subr.mxu0 0.0
  %449 = vmatpush1.xpose.msra.mxu0 %v282
  %450 = vmatprep.subr.mxu0 0.0
  %451 = vmatpush1.xpose.msra.mxu0 %v285
  %452 = vmatprep.subr.mxu0 0.0
  %453 = vmatpush1.xpose.msra.mxu0 %v288
  %454 = vmatprep.subr.mxu0 0.0
  %455 = vmatpush1.xpose.msra.mxu0 %v291
  %456 = vmatprep.subr.mxu0 0.0
  %457 = vmatpush1.xpose.msra.mxu0 %v294
  %458 = vmatprep.subr.mxu0 0.0
  %459 = vmatpush1.xpose.msra.mxu0 %v297
  %460 = vmatprep.subr.mxu0 0.0
  %461 = vmatpush1.xpose.msra.mxu0 %v300
  %462 = vmatprep.subr.mxu0 0.0
  %463 = vmatpush1.xpose.msra.mxu0 %v303
  %464 = vmatprep.subr.mxu0 0.0
  %465 = vmatpush1.xpose.msra.mxu0 %v306
  %466 = vmatprep.subr.mxu0 0.0
  %467 = vmatpush1.xpose.msra.mxu0 %v309
  %468 = vmatprep.subr.mxu0 0.0
  %469 = vmatpush1.xpose.msra.mxu0 %v312
  %470 = vmatprep.subr.mxu0 0.0
  %471 = vmatpush1.xpose.msra.mxu0 %v315
  %472 = vmatprep.subr.mxu0 0.0
  %473 = vmatpush1.xpose.msra.mxu0 %v318
  %474 = vmatprep.subr.mxu0 0.0
  %475 = vmatpush1.xpose.msra.mxu0 %v321
  %476 = vmatprep.mubr.f32.mxu0 0.0
  %477 = vmatmul.mubr.f32.gmra.mrb[0].mxu0 %v120
  %v478 = vpop.f32.mrb[0].mxu0
  %v479 = vadd.f32 %v101, %v478
  %v480 = vpop.f32.mrb[0].mxu0
  %v481 = vadd.f32 %v101, %v480
  %482 = vmatprep.mubr.f32.mxu0 0.0
  %483 = vmatmul.mubr.f32.gmra.mrb[0].mxu0 %v123
  %v484 = vpop.f32.mrb[0].mxu0
  %v485 = vadd.f32 %v106, %v484
  %v486 = vpop.f32.mrb[0].mxu0
  %v487 = vadd.f32 %v106, %v486
  %488 = vmatprep.mubr.f32.mxu0 0.0
  %489 = vmatmul.mubr.f32.gmra.mrb[0].mxu0 %v126
  %v490 = vpop.f32.mrb[0].mxu0
  %v491 = vadd.f32 %v111, %v490
  %v492 = vpop.f32.mrb[0].mxu0
  %v493 = vadd.f32 %v111, %v492
  %494 = vmatprep.mubr.f32.mxu0 0.0
  %495 = vmatmul.mubr.f32.gmra.mrb[0].mxu0 %v129
  %v496 = vpop.f32.mrb[0].mxu0
  %v497 = vadd.f32 %v116, %v496
  %v498 = vpop.f32.mrb[0].mxu0
  %v499 = vadd.f32 %v116, %v498
  %500 = vdwg.mxu0
  %v501 = vmul.f32 %v390, 0.31830987
  %v502 = vmul.f32 %v392, 0.31830987
  %v503 = vmul.f32 %v479, 0.31830987
  %v504 = vmul.f32 %v481, 0.31830987
  %v505 = vmul.f32 %v396, 0.31830987
  %v506 = vmul.f32 %v398, 0.31830987
  %v507 = vmul.f32 %v485, 0.31830987
  %v508 = vmul.f32 %v487, 0.31830987
  %v509 = vmul.f32 %v402, 0.31830987
  %v510 = vmul.f32 %v404, 0.31830987
  %v511 = vmul.f32 %v491, 0.31830987
  %v512 = vmul.f32 %v493, 0.31830987
  %v513 = vmul.f32 %v408, 0.31830987
  %v514 = vmul.f32 %v410, 0.31830987
  %v515 = vmul.f32 %v497, 0.31830987
  %v516 = vmul.f32 %v499, 0.31830987
  %v517 = vadd.f32 %v501, 0.5
  %v518 = vadd.f32 %v502, 0.5
  %v519 = vadd.f32 %v503, 0.5
  %v520 = vadd.f32 %v504, 0.5
  %v521 = vadd.f32 %v505, 0.5
  %v522 = vadd.f32 %v506, 0.5
  %v523 = vadd.f32 %v507, 0.5
  %v524 = vadd.f32 %v508, 0.5
  %v525 = vadd.f32 %v509, 0.5
  %v526 = vadd.f32 %v510, 0.5
  %v527 = vadd.f32 %v511, 0.5
  %v528 = vadd.f32 %v512, 0.5
  %v529 = vadd.f32 %v513, 0.5
  %v530 = vadd.f32 %v514, 0.5
  %v531 = vadd.f32 %v515, 0.5
  %v532 = vadd.f32 %v516, 0.5
  %v533 = vfloor.f32 %v517
  %v534 = vfloor.f32 %v518
  %v535 = vfloor.f32 %v519
  %v536 = vfloor.f32 %v520
  %v537 = vfloor.f32 %v521
  %v538 = vfloor.f32 %v522
  %v539 = vfloor.f32 %v523
  %v540 = vfloor.f32 %v524
  %v541 = vfloor.f32 %v525
  %v542 = vfloor.f32 %v526
  %v543 = vfloor.f32 %v527
  %v544 = vfloor.f32 %v528
  %v545 = vfloor.f32 %v529
  %v546 = vfloor.f32 %v530
  %v547 = vfloor.f32 %v531
  %v548 = vfloor.f32 %v532
  %v549 = vmul.f32 %v533, 3.140625
  %v550 = vmul.f32 %v534, 3.140625
  %v551 = vmul.f32 %v535, 3.140625
  %v552 = vmul.f32 %v536, 3.140625
  %v553 = vmul.f32 %v537, 3.140625
  %v554 = vmul.f32 %v538, 3.140625
  %v555 = vmul.f32 %v539, 3.140625
  %v556 = vmul.f32 %v540, 3.140625
  %v557 = vmul.f32 %v541, 3.140625
  %v558 = vmul.f32 %v542, 3.140625
  %v559 = vmul.f32 %v543, 3.140625
  %v560 = vmul.f32 %v544, 3.140625
  %v561 = vmul.f32 %v545, 3.140625
  %v562 = vmul.f32 %v546, 3.140625
  %v563 = vmul.f32 %v547, 3.140625
  %v564 = vmul.f32 %v548, 3.140625
  %v565 = vsub.f32 %v390, %v549
  %v566 = vsub.f32 %v392, %v550
  %v567 = vsub.f32 %v479, %v551
  %v568 = vsub.f32 %v481, %v552
  %v569 = vsub.f32 %v396, %v553
  %v570 = vsub.f32 %v398, %v554
  %v571 = vsub.f32 %v485, %v555
  %v572 = vsub.f32 %v487, %v556
  %v573 = vsub.f32 %v402, %v557
  %v574 = vsub.f32 %v404, %v558
  %v575 = vsub.f32 %v491, %v559
  %v576 = vsub.f32 %v493, %v560
  %v577 = vsub.f32 %v408, %v561
  %v578 = vsub.f32 %v410, %v562
  %v579 = vsub.f32 %v497, %v563
  %v580 = vsub.f32 %v499, %v564
  %v581 = vmul.f32 %v533, 0.0009676536
  %v582 = vmul.f32 %v534, 0.0009676536
  %v583 = vmul.f32 %v535, 0.0009676536
  %v584 = vmul.f32 %v536, 0.0009676536
  %v585 = vmul.f32 %v537, 0.0009676536
  %v586 = vmul.f32 %v538, 0.0009676536
  %v587 = vmul.f32 %v539, 0.0009676536
  %v588 = vmul.f32 %v540, 0.0009676536
  %v589 = vmul.f32 %v541, 0.0009676536
  %v590 = vmul.f32 %v542, 0.0009676536
  %v591 = vmul.f32 %v543, 0.0009676536
  %v592 = vmul.f32 %v544, 0.0009676536
  %v593 = vmul.f32 %v545, 0.0009676536
  %v594 = vmul.f32 %v546, 0.0009676536
  %v595 = vmul.f32 %v547, 0.0009676536
  %v596 = vmul.f32 %v548, 0.0009676536
  %v597 = vsub.f32 %v565, %v581
  %v598 = vsub.f32 %v566, %v582
  %v599 = vsub.f32 %v567, %v583
  %v600 = vsub.f32 %v568, %v584
  %v601 = vsub.f32 %v569, %v585
  %v602 = vsub.f32 %v570, %v586
  %v603 = vsub.f32 %v571, %v587
  %v604 = vsub.f32 %v572, %v588
  %v605 = vsub.f32 %v573, %v589
  %v606 = vsub.f32 %v574, %v590
  %v607 = vsub.f32 %v575, %v591
  %v608 = vsub.f32 %v576, %v592
  %v609 = vsub.f32 %v577, %v593
  %v610 = vsub.f32 %v578, %v594
  %v611 = vsub.f32 %v579, %v595
  %v612 = vsub.f32 %v580, %v596
  %v613 = vcvt.f32.s32.to.zero.pseudo %v533
  %v614 = vcvt.f32.s32.to.zero.pseudo %v534
  %v615 = vcvt.f32.s32.to.zero.pseudo %v535
  %v616 = vcvt.f32.s32.to.zero.pseudo %v536
  %v617 = vcvt.f32.s32.to.zero.pseudo %v537
  %v618 = vcvt.f32.s32.to.zero.pseudo %v538
  %v619 = vcvt.f32.s32.to.zero.pseudo %v539
  %v620 = vcvt.f32.s32.to.zero.pseudo %v540
  %v621 = vcvt.f32.s32.to.zero.pseudo %v541
  %v622 = vcvt.f32.s32.to.zero.pseudo %v542
  %v623 = vcvt.f32.s32.to.zero.pseudo %v543
  %v624 = vcvt.f32.s32.to.zero.pseudo %v544
  %v625 = vcvt.f32.s32.to.zero.pseudo %v545
  %v626 = vcvt.f32.s32.to.zero.pseudo %v546
  %v627 = vcvt.f32.s32.to.zero.pseudo %v547
  %v628 = vcvt.f32.s32.to.zero.pseudo %v548
  %v629 = vand.u32 %v613, 1
  %v630 = vand.u32 %v614, 1
  %v631 = vand.u32 %v615, 1
  %v632 = vand.u32 %v616, 1
  %v633 = vand.u32 %v617, 1
  %v634 = vand.u32 %v618, 1
  %v635 = vand.u32 %v619, 1
  %v636 = vand.u32 %v620, 1
  %v637 = vand.u32 %v621, 1
  %v638 = vand.u32 %v622, 1
  %v639 = vand.u32 %v623, 1
  %v640 = vand.u32 %v624, 1
  %v641 = vand.u32 %v625, 1
  %v642 = vand.u32 %v626, 1
  %v643 = vand.u32 %v627, 1
  %v644 = vand.u32 %v628, 1
  %v645 = vcvt.s32.f32 %v629
  %v646 = vcvt.s32.f32 %v630
  %v647 = vcvt.s32.f32 %v631
  %v648 = vcvt.s32.f32 %v632
  %v649 = vcvt.s32.f32 %v633
  %v650 = vcvt.s32.f32 %v634
  %v651 = vcvt.s32.f32 %v635
  %v652 = vcvt.s32.f32 %v636
  %v653 = vcvt.s32.f32 %v637
  %v654 = vcvt.s32.f32 %v638
  %v655 = vcvt.s32.f32 %v639
  %v656 = vcvt.s32.f32 %v640
  %v657 = vcvt.s32.f32 %v641
  %v658 = vcvt.s32.f32 %v642
  %v659 = vcvt.s32.f32 %v643
  %v660 = vcvt.s32.f32 %v644
  %v661 = vmul.f32 %v645, 2.0
  %v662 = vmul.f32 %v646, 2.0
  %v663 = vmul.f32 %v647, 2.0
  %v664 = vmul.f32 %v648, 2.0
  %v665 = vmul.f32 %v649, 2.0
  %v666 = vmul.f32 %v650, 2.0
  %v667 = vmul.f32 %v651, 2.0
  %v668 = vmul.f32 %v652, 2.0
  %v669 = vmul.f32 %v653, 2.0
  %v670 = vmul.f32 %v654, 2.0
  %v671 = vmul.f32 %v655, 2.0
  %v672 = vmul.f32 %v656, 2.0
  %v673 = vmul.f32 %v657, 2.0
  %v674 = vmul.f32 %v658, 2.0
  %v675 = vmul.f32 %v659, 2.0
  %v676 = vmul.f32 %v660, 2.0
  %v677 = vsub.f32 1.0, %v661
  %v678 = vsub.f32 1.0, %v662
  %v679 = vsub.f32 1.0, %v663
  %v680 = vsub.f32 1.0, %v664
  %v681 = vsub.f32 1.0, %v665
  %v682 = vsub.f32 1.0, %v666
  %v683 = vsub.f32 1.0, %v667
  %v684 = vsub.f32 1.0, %v668
  %v685 = vsub.f32 1.0, %v669
  %v686 = vsub.f32 1.0, %v670
  %v687 = vsub.f32 1.0, %v671
  %v688 = vsub.f32 1.0, %v672
  %v689 = vsub.f32 1.0, %v673
  %v690 = vsub.f32 1.0, %v674
  %v691 = vsub.f32 1.0, %v675
  %v692 = vsub.f32 1.0, %v676
  %v693 = vmul.f32 %v597, %v677
  %v694 = vmul.f32 %v598, %v678
  %v695 = vmul.f32 %v599, %v679
  %v696 = vmul.f32 %v600, %v680
  %v697 = vmul.f32 %v601, %v681
  %v698 = vmul.f32 %v602, %v682
  %v699 = vmul.f32 %v603, %v683
  %v700 = vmul.f32 %v604, %v684
  %v701 = vmul.f32 %v605, %v685
  %v702 = vmul.f32 %v606, %v686
  %v703 = vmul.f32 %v607, %v687
  %v704 = vmul.f32 %v608, %v688
  %v705 = vmul.f32 %v609, %v689
  %v706 = vmul.f32 %v610, %v690
  %v707 = vmul.f32 %v611, %v691
  %v708 = vmul.f32 %v612, %v692
  %v709 = vmul.f32 %v693, %v693
  %v710 = vmul.f32 %v694, %v694
  %v711 = vmul.f32 %v695, %v695
  %v712 = vmul.f32 %v696, %v696
  %v713 = vmul.f32 %v697, %v697
  %v714 = vmul.f32 %v698, %v698
  %v715 = vmul.f32 %v699, %v699
  %v716 = vmul.f32 %v700, %v700
  %v717 = vmul.f32 %v701, %v701
  %v718 = vmul.f32 %v702, %v702
  %v719 = vmul.f32 %v703, %v703
  %v720 = vmul.f32 %v704, %v704
  %v721 = vmul.f32 %v705, %v705
  %v722 = vmul.f32 %v706, %v706
  %v723 = vmul.f32 %v707, %v707
  %v724 = vmul.f32 %v708, %v708
  %v725 = vmul.f32 %v709, 2.7557319e-06
  %v726 = vmul.f32 %v710, 2.7557319e-06
  %v727 = vmul.f32 %v711, 2.7557319e-06
  %v728 = vmul.f32 %v712, 2.7557319e-06
  %v729 = vmul.f32 %v713, 2.7557319e-06
  %v730 = vmul.f32 %v714, 2.7557319e-06
  %v731 = vmul.f32 %v715, 2.7557319e-06
  %v732 = vmul.f32 %v716, 2.7557319e-06
  %v733 = vmul.f32 %v717, 2.7557319e-06
  %v734 = vmul.f32 %v718, 2.7557319e-06
  %v735 = vmul.f32 %v719, 2.7557319e-06
  %v736 = vmul.f32 %v720, 2.7557319e-06
  %v737 = vmul.f32 %v721, 2.7557319e-06
  %v738 = vmul.f32 %v722, 2.7557319e-06
  %v739 = vmul.f32 %v723, 2.7557319e-06
  %v740 = vmul.f32 %v724, 2.7557319e-06
  %v741 = vadd.f32 %v725, -0.0001984127
  %v742 = vadd.f32 %v726, -0.0001984127
  %v743 = vadd.f32 %v727, -0.0001984127
  %v744 = vadd.f32 %v728, -0.0001984127
  %v745 = vadd.f32 %v729, -0.0001984127
  %v746 = vadd.f32 %v730, -0.0001984127
  %v747 = vadd.f32 %v731, -0.0001984127
  %v748 = vadd.f32 %v732, -0.0001984127
  %v749 = vadd.f32 %v733, -0.0001984127
  %v750 = vadd.f32 %v734, -0.0001984127
  %v751 = vadd.f32 %v735, -0.0001984127
  %v752 = vadd.f32 %v736, -0.0001984127
  %v753 = vadd.f32 %v737, -0.0001984127
  %v754 = vadd.f32 %v738, -0.0001984127
  %v755 = vadd.f32 %v739, -0.0001984127
  %v756 = vadd.f32 %v740, -0.0001984127
  %v757 = vmul.f32 %v709, %v741
  %v758 = vmul.f32 %v710, %v742
  %v759 = vmul.f32 %v711, %v743
  %v760 = vmul.f32 %v712, %v744
  %v761 = vmul.f32 %v713, %v745
  %v762 = vmul.f32 %v714, %v746
  %v763 = vmul.f32 %v715, %v747
  %v764 = vmul.f32 %v716, %v748
  %v765 = vmul.f32 %v717, %v749
  %v766 = vmul.f32 %v718, %v750
  %v767 = vmul.f32 %v719, %v751
  %v768 = vmul.f32 %v720, %v752
  %v769 = vmul.f32 %v721, %v753
  %v770 = vmul.f32 %v722, %v754
  %v771 = vmul.f32 %v723, %v755
  %v772 = vmul.f32 %v724, %v756
  %v773 = vadd.f32 %v757, 0.008333334
  %v774 = vadd.f32 %v758, 0.008333334
  %v775 = vadd.f32 %v759, 0.008333334
  %v776 = vadd.f32 %v760, 0.008333334
  %v777 = vadd.f32 %v761, 0.008333334
  %v778 = vadd.f32 %v762, 0.008333334
  %v779 = vadd.f32 %v763, 0.008333334
  %v780 = vadd.f32 %v764, 0.008333334
  %v781 = vadd.f32 %v765, 0.008333334
  %v782 = vadd.f32 %v766, 0.008333334
  %v783 = vadd.f32 %v767, 0.008333334
  %v784 = vadd.f32 %v768, 0.008333334
  %v785 = vadd.f32 %v769, 0.008333334
  %v786 = vadd.f32 %v770, 0.008333334
  %v787 = vadd.f32 %v771, 0.008333334
  %v788 = vadd.f32 %v772, 0.008333334
  %v789 = vmul.f32 %v709, %v773
  %v790 = vmul.f32 %v710, %v774
  %v791 = vmul.f32 %v711, %v775
  %v792 = vmul.f32 %v712, %v776
  %v793 = vmul.f32 %v713, %v777
  %v794 = vmul.f32 %v714, %v778
  %v795 = vmul.f32 %v715, %v779
  %v796 = vmul.f32 %v716, %v780
  %v797 = vmul.f32 %v717, %v781
  %v798 = vmul.f32 %v718, %v782
  %v799 = vmul.f32 %v719, %v783
  %v800 = vmul.f32 %v720, %v784
  %v801 = vmul.f32 %v721, %v785
  %v802 = vmul.f32 %v722, %v786
  %v803 = vmul.f32 %v723, %v787
  %v804 = vmul.f32 %v724, %v788
  %v805 = vadd.f32 %v789, -0.16666667
  %v806 = vadd.f32 %v790, -0.16666667
  %v807 = vadd.f32 %v791, -0.16666667
  %v808 = vadd.f32 %v792, -0.16666667
  %v809 = vadd.f32 %v793, -0.16666667
  %v810 = vadd.f32 %v794, -0.16666667
  %v811 = vadd.f32 %v795, -0.16666667
  %v812 = vadd.f32 %v796, -0.16666667
  %v813 = vadd.f32 %v797, -0.16666667
  %v814 = vadd.f32 %v798, -0.16666667
  %v815 = vadd.f32 %v799, -0.16666667
  %v816 = vadd.f32 %v800, -0.16666667
  %v817 = vadd.f32 %v801, -0.16666667
  %v818 = vadd.f32 %v802, -0.16666667
  %v819 = vadd.f32 %v803, -0.16666667
  %v820 = vadd.f32 %v804, -0.16666667
  %v821 = vmul.f32 %v709, %v805
  %v822 = vmul.f32 %v710, %v806
  %v823 = vmul.f32 %v711, %v807
  %v824 = vmul.f32 %v712, %v808
  %v825 = vmul.f32 %v713, %v809
  %v826 = vmul.f32 %v714, %v810
  %v827 = vmul.f32 %v715, %v811
  %v828 = vmul.f32 %v716, %v812
  %v829 = vmul.f32 %v717, %v813
  %v830 = vmul.f32 %v718, %v814
  %v831 = vmul.f32 %v719, %v815
  %v832 = vmul.f32 %v720, %v816
  %v833 = vmul.f32 %v721, %v817
  %v834 = vmul.f32 %v722, %v818
  %v835 = vmul.f32 %v723, %v819
  %v836 = vmul.f32 %v724, %v820
  %v837 = vadd.f32 %v821, 1.0
  %v838 = vadd.f32 %v822, 1.0
  %v839 = vadd.f32 %v823, 1.0
  %v840 = vadd.f32 %v824, 1.0
  %v841 = vadd.f32 %v825, 1.0
  %v842 = vadd.f32 %v826, 1.0
  %v843 = vadd.f32 %v827, 1.0
  %v844 = vadd.f32 %v828, 1.0
  %v845 = vadd.f32 %v829, 1.0
  %v846 = vadd.f32 %v830, 1.0
  %v847 = vadd.f32 %v831, 1.0
  %v848 = vadd.f32 %v832, 1.0
  %v849 = vadd.f32 %v833, 1.0
  %v850 = vadd.f32 %v834, 1.0
  %v851 = vadd.f32 %v835, 1.0
  %v852 = vadd.f32 %v836, 1.0
  %v853 = vmul.f32 %v693, %v837
  %v854 = vmul.f32 %v694, %v838
  %v855 = vmul.f32 %v695, %v839
  %v856 = vmul.f32 %v696, %v840
  %v857 = vmul.f32 %v697, %v841
  %v858 = vmul.f32 %v698, %v842
  %v859 = vmul.f32 %v699, %v843
  %v860 = vmul.f32 %v700, %v844
  %v861 = vmul.f32 %v701, %v845
  %v862 = vmul.f32 %v702, %v846
  %v863 = vmul.f32 %v703, %v847
  %v864 = vmul.f32 %v704, %v848
  %v865 = vmul.f32 %v705, %v849
  %v866 = vmul.f32 %v706, %v850
  %v867 = vmul.f32 %v707, %v851
  %v868 = vmul.f32 %v708, %v852
  %v869 = vld [vmem:[%s3] sm:$0xff]
  %v870 = vld [vmem:[%s3 + $0x8] sm:$0xff]
  %v871 = vld [vmem:[%s3 + $0x10] sm:$0xff]
  %v872 = vld [vmem:[%s3 + $0x18] sm:$0xff]
  %v873 = vld [vmem:[%s4] sm:$0xff]
  %v874 = vld [vmem:[%s4 + $0x8] sm:$0xff]
  %v875 = vld [vmem:[%s4 + $0x10] sm:$0xff]
  %v876 = vld [vmem:[%s4 + $0x18] sm:$0xff]
  %878 = vset.pattern.permute.xlu0 0
  %879 = vperm.xlu0 %878, %v873
  %v880 = vpop.permute.xlu0 %879
  %883 = vset.pattern.permute.xlu0 0
  %884 = vperm.xlu0 %883, %v874
  %v885 = vpop.permute.xlu0 %884
  %888 = vset.pattern.permute.xlu0 0
  %889 = vperm.xlu0 %888, %v875
  %v890 = vpop.permute.xlu0 %889
  %893 = vset.pattern.permute.xlu0 0
  %894 = vperm.xlu0 %893, %v876
  %v895 = vpop.permute.xlu0 %894
  %vm897 = vcmask 261120
  %v899 = vsel %vm897, %v869, 0
  %v902 = vsel %vm897, %v870, 0
  %v905 = vsel %vm897, %v871, 0
  %v908 = vsel %vm897, %v872, 0
  %910 = vmatprep.subr.mxu0 %v854
  %911 = vmatpush1.msra.mxu0 %v853
  %912 = vmatprep.subr.mxu0 %v858
  %913 = vmatpush1.msra.mxu0 %v857
  %914 = vmatprep.subr.mxu0 %v862
  %915 = vmatpush1.msra.mxu0 %v861
  %916 = vmatprep.subr.mxu0 %v866
  %917 = vmatpush1.msra.mxu0 %v865
  %918 = vmatprep.subr.mxu0 0.0
  %919 = vmatpush1.msra.mxu0 0.0
  %920 = vmatprep.subr.mxu0 0.0
  %921 = vmatpush1.msra.mxu0 0.0
  %922 = vmatprep.subr.mxu0 0.0
  %923 = vmatpush1.msra.mxu0 0.0
  %924 = vmatprep.subr.mxu0 0.0
  %925 = vmatpush1.msra.mxu0 0.0
  %926 = vmatprep.subr.mxu0 0.0
  %927 = vmatpush1.msra.mxu0 0.0
  %928 = vmatprep.subr.mxu0 0.0
  %929 = vmatpush1.msra.mxu0 0.0
  %930 = vmatprep.subr.mxu0 0.0
  %931 = vmatpush1.msra.mxu0 0.0
  %932 = vmatprep.subr.mxu0 0.0
  %933 = vmatpush1.msra.mxu0 0.0
  %934 = vmatprep.subr.mxu0 0.0
  %935 = vmatpush1.msra.mxu0 0.0
  %936 = vmatprep.subr.mxu0 0.0
  %937 = vmatpush1.msra.mxu0 0.0
  %938 = vmatprep.subr.mxu0 0.0
  %939 = vmatpush1.msra.mxu0 0.0
  %940 = vmatprep.subr.mxu0 0.0
  %941 = vmatpush1.msra.mxu0 0.0
  %942 = vmatprep.subr.mxu0 0.0
  %943 = vmatpush1.msra.mxu0 0.0
  %944 = vmatprep.subr.mxu0 0.0
  %945 = vmatpush1.msra.mxu0 0.0
  %946 = vmatprep.subr.mxu0 0.0
  %947 = vmatpush1.msra.mxu0 0.0
  %948 = vmatprep.subr.mxu0 0.0
  %949 = vmatpush1.msra.mxu0 0.0
  %950 = vmatprep.subr.mxu0 0.0
  %951 = vmatpush1.msra.mxu0 0.0
  %952 = vmatprep.subr.mxu0 0.0
  %953 = vmatpush1.msra.mxu0 0.0
  %954 = vmatprep.subr.mxu0 0.0
  %955 = vmatpush1.msra.mxu0 0.0
  %956 = vmatprep.subr.mxu0 0.0
  %957 = vmatpush1.msra.mxu0 0.0
  %958 = vmatprep.subr.mxu0 0.0
  %959 = vmatpush1.msra.mxu0 0.0
  %960 = vmatprep.subr.mxu0 0.0
  %961 = vmatpush1.msra.mxu0 0.0
  %962 = vmatprep.subr.mxu0 0.0
  %963 = vmatpush1.msra.mxu0 0.0
  %964 = vmatprep.subr.mxu0 0.0
  %965 = vmatpush1.msra.mxu0 0.0
  %966 = vmatprep.subr.mxu0 0.0
  %967 = vmatpush1.msra.mxu0 0.0
  %968 = vmatprep.subr.mxu0 0.0
  %969 = vmatpush1.msra.mxu0 0.0
  %970 = vmatprep.subr.mxu0 0.0
  %971 = vmatpush1.msra.mxu0 0.0
  %972 = vmatprep.subr.mxu0 0.0
  %973 = vmatpush1.msra.mxu0 0.0
  %974 = vmatprep.mubr.f32.mxu0 0.0
  %975 = vmatmul.mubr.f32.gmra.mrb[0].mxu0 %v899
  %v976 = vpop.f32.mrb[0].mxu0
  %v977 = vadd.f32 %v880, %v976
  %v978 = vpop.f32.mrb[0].mxu0
  %v979 = vadd.f32 %v880, %v978
  %980 = vmatprep.mubr.f32.mxu0 0.0
  %981 = vmatmul.mubr.f32.gmra.mrb[0].mxu0 %v902
  %v982 = vpop.f32.mrb[0].mxu0
  %v983 = vadd.f32 %v885, %v982
  %v984 = vpop.f32.mrb[0].mxu0
  %v985 = vadd.f32 %v885, %v984
  %986 = vmatprep.mubr.f32.mxu0 0.0
  %987 = vmatmul.mubr.f32.gmra.mrb[0].mxu0 %v905
  %v988 = vpop.f32.mrb[0].mxu0
  %v989 = vadd.f32 %v890, %v988
  %v990 = vpop.f32.mrb[0].mxu0
  %v991 = vadd.f32 %v890, %v990
  %992 = vmatprep.mubr.f32.mxu0 0.0
  %993 = vmatmul.mubr.f32.gmra.mrb[0].mxu0 %v908
  %v994 = vpop.f32.mrb[0].mxu0
  %v995 = vadd.f32 %v895, %v994
  %v996 = vpop.f32.mrb[0].mxu0
  %v997 = vadd.f32 %v895, %v996
  %998 = vdwg.mxu0
  %999 = vmatprep.subr.mxu0 %v856
  %1000 = vmatpush1.msra.mxu0 %v855
  %1001 = vmatprep.subr.mxu0 %v860
  %1002 = vmatpush1.msra.mxu0 %v859
  %1003 = vmatprep.subr.mxu0 %v864
  %1004 = vmatpush1.msra.mxu0 %v863
  %1005 = vmatprep.subr.mxu0 %v868
  %1006 = vmatpush1.msra.mxu0 %v867
  %1007 = vmatprep.subr.mxu0 0.0
  %1008 = vmatpush1.msra.mxu0 0.0
  %1009 = vmatprep.subr.mxu0 0.0
  %1010 = vmatpush1.msra.mxu0 0.0
  %1011 = vmatprep.subr.mxu0 0.0
  %1012 = vmatpush1.msra.mxu0 0.0
  %1013 = vmatprep.subr.mxu0 0.0
  %1014 = vmatpush1.msra.mxu0 0.0
  %1015 = vmatprep.subr.mxu0 0.0
  %1016 = vmatpush1.msra.mxu0 0.0
  %1017 = vmatprep.subr.mxu0 0.0
  %1018 = vmatpush1.msra.mxu0 0.0
  %1019 = vmatprep.subr.mxu0 0.0
  %1020 = vmatpush1.msra.mxu0 0.0
  %1021 = vmatprep.subr.mxu0 0.0
  %1022 = vmatpush1.msra.mxu0 0.0
  %1023 = vmatprep.subr.mxu0 0.0
  %1024 = vmatpush1.msra.mxu0 0.0
  %1025 = vmatprep.subr.mxu0 0.0
  %1026 = vmatpush1.msra.mxu0 0.0
  %1027 = vmatprep.subr.mxu0 0.0
  %1028 = vmatpush1.msra.mxu0 0.0
  %1029 = vmatprep.subr.mxu0 0.0
  %1030 = vmatpush1.msra.mxu0 0.0
  %1031 = vmatprep.subr.mxu0 0.0
  %1032 = vmatpush1.msra.mxu0 0.0
  %1033 = vmatprep.subr.mxu0 0.0
  %1034 = vmatpush1.msra.mxu0 0.0
  %1035 = vmatprep.subr.mxu0 0.0
  %1036 = vmatpush1.msra.mxu0 0.0
  %1037 = vmatprep.subr.mxu0 0.0
  %1038 = vmatpush1.msra.mxu0 0.0
  %1039 = vmatprep.subr.mxu0 0.0
  %1040 = vmatpush1.msra.mxu0 0.0
  %1041 = vmatprep.subr.mxu0 0.0
  %1042 = vmatpush1.msra.mxu0 0.0
  %1043 = vmatprep.subr.mxu0 0.0
  %1044 = vmatpush1.msra.mxu0 0.0
  %1045 = vmatprep.subr.mxu0 0.0
  %1046 = vmatpush1.msra.mxu0 0.0
  %1047 = vmatprep.subr.mxu0 0.0
  %1048 = vmatpush1.msra.mxu0 0.0
  %1049 = vmatprep.subr.mxu0 0.0
  %1050 = vmatpush1.msra.mxu0 0.0
  %1051 = vmatprep.subr.mxu0 0.0
  %1052 = vmatpush1.msra.mxu0 0.0
  %1053 = vmatprep.subr.mxu0 0.0
  %1054 = vmatpush1.msra.mxu0 0.0
  %1055 = vmatprep.subr.mxu0 0.0
  %1056 = vmatpush1.msra.mxu0 0.0
  %1057 = vmatprep.subr.mxu0 0.0
  %1058 = vmatpush1.msra.mxu0 0.0
  %1059 = vmatprep.subr.mxu0 0.0
  %1060 = vmatpush1.msra.mxu0 0.0
  %1061 = vmatprep.subr.mxu0 0.0
  %1062 = vmatpush1.msra.mxu0 0.0
  %1063 = vmatprep.mubr.f32.mxu0 0.0
  %1064 = vmatmul.mubr.f32.gmra.mrb[0].mxu0 %v899
  %v1065 = vpop.f32.mrb[0].mxu0
  %v1066 = vadd.f32 %v880, %v1065
  %v1067 = vpop.f32.mrb[0].mxu0
  %v1068 = vadd.f32 %v880, %v1067
  %1069 = vmatprep.mubr.f32.mxu0 0.0
  %1070 = vmatmul.mubr.f32.gmra.mrb[0].mxu0 %v902
  %v1071 = vpop.f32.mrb[0].mxu0
  %v1072 = vadd.f32 %v885, %v1071
  %v1073 = vpop.f32.mrb[0].mxu0
  %v1074 = vadd.f32 %v885, %v1073
  %1075 = vmatprep.mubr.f32.mxu0 0.0
  %1076 = vmatmul.mubr.f32.gmra.mrb[0].mxu0 %v905
  %v1077 = vpop.f32.mrb[0].mxu0
  %v1078 = vadd.f32 %v890, %v1077
  %v1079 = vpop.f32.mrb[0].mxu0
  %v1080 = vadd.f32 %v890, %v1079
  %1081 = vmatprep.mubr.f32.mxu0 0.0
  %1082 = vmatmul.mubr.f32.gmra.mrb[0].mxu0 %v908
  %v1083 = vpop.f32.mrb[0].mxu0
  %v1084 = vadd.f32 %v895, %v1083
  %v1085 = vpop.f32.mrb[0].mxu0
  %v1086 = vadd.f32 %v895, %v1085
  %1087 = vdwg.mxu0
  %v1088 = vmul.f32 %v977, 0.31830987
  %v1089 = vmul.f32 %v979, 0.31830987
  %v1090 = vmul.f32 %v1066, 0.31830987
  %v1091 = vmul.f32 %v1068, 0.31830987
  %v1092 = vmul.f32 %v983, 0.31830987
  %v1093 = vmul.f32 %v985, 0.31830987
  %v1094 = vmul.f32 %v1072, 0.31830987
  %v1095 = vmul.f32 %v1074, 0.31830987
  %v1096 = vmul.f32 %v989, 0.31830987
  %v1097 = vmul.f32 %v991, 0.31830987
  %v1098 = vmul.f32 %v1078, 0.31830987
  %v1099 = vmul.f32 %v1080, 0.31830987
  %v1100 = vmul.f32 %v995, 0.31830987
  %v1101 = vmul.f32 %v997, 0.31830987
  %v1102 = vmul.f32 %v1084, 0.31830987
  %v1103 = vmul.f32 %v1086, 0.31830987
  %v1104 = vadd.f32 %v1088, 0.5
  %v1105 = vadd.f32 %v1089, 0.5
  %v1106 = vadd.f32 %v1090, 0.5
  %v1107 = vadd.f32 %v1091, 0.5
  %v1108 = vadd.f32 %v1092, 0.5
  %v1109 = vadd.f32 %v1093, 0.5
  %v1110 = vadd.f32 %v1094, 0.5
  %v1111 = vadd.f32 %v1095, 0.5
  %v1112 = vadd.f32 %v1096, 0.5
  %v1113 = vadd.f32 %v1097, 0.5
  %v1114 = vadd.f32 %v1098, 0.5
  %v1115 = vadd.f32 %v1099, 0.5
  %v1116 = vadd.f32 %v1100, 0.5
  %v1117 = vadd.f32 %v1101, 0.5
  %v1118 = vadd.f32 %v1102, 0.5
  %v1119 = vadd.f32 %v1103, 0.5
  %v1120 = vfloor.f32 %v1104
  %v1121 = vfloor.f32 %v1105
  %v1122 = vfloor.f32 %v1106
  %v1123 = vfloor.f32 %v1107
  %v1124 = vfloor.f32 %v1108
  %v1125 = vfloor.f32 %v1109
  %v1126 = vfloor.f32 %v1110
  %v1127 = vfloor.f32 %v1111
  %v1128 = vfloor.f32 %v1112
  %v1129 = vfloor.f32 %v1113
  %v1130 = vfloor.f32 %v1114
  %v1131 = vfloor.f32 %v1115
  %v1132 = vfloor.f32 %v1116
  %v1133 = vfloor.f32 %v1117
  %v1134 = vfloor.f32 %v1118
  %v1135 = vfloor.f32 %v1119
  %v1136 = vmul.f32 %v1120, 3.140625
  %v1137 = vmul.f32 %v1121, 3.140625
  %v1138 = vmul.f32 %v1122, 3.140625
  %v1139 = vmul.f32 %v1123, 3.140625
  %v1140 = vmul.f32 %v1124, 3.140625
  %v1141 = vmul.f32 %v1125, 3.140625
  %v1142 = vmul.f32 %v1126, 3.140625
  %v1143 = vmul.f32 %v1127, 3.140625
  %v1144 = vmul.f32 %v1128, 3.140625
  %v1145 = vmul.f32 %v1129, 3.140625
  %v1146 = vmul.f32 %v1130, 3.140625
  %v1147 = vmul.f32 %v1131, 3.140625
  %v1148 = vmul.f32 %v1132, 3.140625
  %v1149 = vmul.f32 %v1133, 3.140625
  %v1150 = vmul.f32 %v1134, 3.140625
  %v1151 = vmul.f32 %v1135, 3.140625
  %v1152 = vsub.f32 %v977, %v1136
  %v1153 = vsub.f32 %v979, %v1137
  %v1154 = vsub.f32 %v1066, %v1138
  %v1155 = vsub.f32 %v1068, %v1139
  %v1156 = vsub.f32 %v983, %v1140
  %v1157 = vsub.f32 %v985, %v1141
  %v1158 = vsub.f32 %v1072, %v1142
  %v1159 = vsub.f32 %v1074, %v1143
  %v1160 = vsub.f32 %v989, %v1144
  %v1161 = vsub.f32 %v991, %v1145
  %v1162 = vsub.f32 %v1078, %v1146
  %v1163 = vsub.f32 %v1080, %v1147
  %v1164 = vsub.f32 %v995, %v1148
  %v1165 = vsub.f32 %v997, %v1149
  %v1166 = vsub.f32 %v1084, %v1150
  %v1167 = vsub.f32 %v1086, %v1151
  %v1168 = vmul.f32 %v1120, 0.0009676536
  %v1169 = vmul.f32 %v1121, 0.0009676536
  %v1170 = vmul.f32 %v1122, 0.0009676536
  %v1171 = vmul.f32 %v1123, 0.0009676536
  %v1172 = vmul.f32 %v1124, 0.0009676536
  %v1173 = vmul.f32 %v1125, 0.0009676536
  %v1174 = vmul.f32 %v1126, 0.0009676536
  %v1175 = vmul.f32 %v1127, 0.0009676536
  %v1176 = vmul.f32 %v1128, 0.0009676536
  %v1177 = vmul.f32 %v1129, 0.0009676536
  %v1178 = vmul.f32 %v1130, 0.0009676536
  %v1179 = vmul.f32 %v1131, 0.0009676536
  %v1180 = vmul.f32 %v1132, 0.0009676536
  %v1181 = vmul.f32 %v1133, 0.0009676536
  %v1182 = vmul.f32 %v1134, 0.0009676536
  %v1183 = vmul.f32 %v1135, 0.0009676536
  %v1184 = vsub.f32 %v1152, %v1168
  %v1185 = vsub.f32 %v1153, %v1169
  %v1186 = vsub.f32 %v1154, %v1170
  %v1187 = vsub.f32 %v1155, %v1171
  %v1188 = vsub.f32 %v1156, %v1172
  %v1189 = vsub.f32 %v1157, %v1173
  %v1190 = vsub.f32 %v1158, %v1174
  %v1191 = vsub.f32 %v1159, %v1175
  %v1192 = vsub.f32 %v1160, %v1176
  %v1193 = vsub.f32 %v1161, %v1177
  %v1194 = vsub.f32 %v1162, %v1178
  %v1195 = vsub.f32 %v1163, %v1179
  %v1196 = vsub.f32 %v1164, %v1180
  %v1197 = vsub.f32 %v1165, %v1181
  %v1198 = vsub.f32 %v1166, %v1182
  %v1199 = vsub.f32 %v1167, %v1183
  %v1200 = vcvt.f32.s32.to.zero.pseudo %v1120
  %v1201 = vcvt.f32.s32.to.zero.pseudo %v1121
  %v1202 = vcvt.f32.s32.to.zero.pseudo %v1122
  %v1203 = vcvt.f32.s32.to.zero.pseudo %v1123
  %v1204 = vcvt.f32.s32.to.zero.pseudo %v1124
  %v1205 = vcvt.f32.s32.to.zero.pseudo %v1125
  %v1206 = vcvt.f32.s32.to.zero.pseudo %v1126
  %v1207 = vcvt.f32.s32.to.zero.pseudo %v1127
  %v1208 = vcvt.f32.s32.to.zero.pseudo %v1128
  %v1209 = vcvt.f32.s32.to.zero.pseudo %v1129
  %v1210 = vcvt.f32.s32.to.zero.pseudo %v1130
  %v1211 = vcvt.f32.s32.to.zero.pseudo %v1131
  %v1212 = vcvt.f32.s32.to.zero.pseudo %v1132
  %v1213 = vcvt.f32.s32.to.zero.pseudo %v1133
  %v1214 = vcvt.f32.s32.to.zero.pseudo %v1134
  %v1215 = vcvt.f32.s32.to.zero.pseudo %v1135
  %v1216 = vand.u32 %v1200, 1
  %v1217 = vand.u32 %v1201, 1
  %v1218 = vand.u32 %v1202, 1
  %v1219 = vand.u32 %v1203, 1
  %v1220 = vand.u32 %v1204, 1
  %v1221 = vand.u32 %v1205, 1
  %v1222 = vand.u32 %v1206, 1
  %v1223 = vand.u32 %v1207, 1
  %v1224 = vand.u32 %v1208, 1
  %v1225 = vand.u32 %v1209, 1
  %v1226 = vand.u32 %v1210, 1
  %v1227 = vand.u32 %v1211, 1
  %v1228 = vand.u32 %v1212, 1
  %v1229 = vand.u32 %v1213, 1
  %v1230 = vand.u32 %v1214, 1
  %v1231 = vand.u32 %v1215, 1
  %v1232 = vcvt.s32.f32 %v1216
  %v1233 = vcvt.s32.f32 %v1217
  %v1234 = vcvt.s32.f32 %v1218
  %v1235 = vcvt.s32.f32 %v1219
  %v1236 = vcvt.s32.f32 %v1220
  %v1237 = vcvt.s32.f32 %v1221
  %v1238 = vcvt.s32.f32 %v1222
  %v1239 = vcvt.s32.f32 %v1223
  %v1240 = vcvt.s32.f32 %v1224
  %v1241 = vcvt.s32.f32 %v1225
  %v1242 = vcvt.s32.f32 %v1226
  %v1243 = vcvt.s32.f32 %v1227
  %v1244 = vcvt.s32.f32 %v1228
  %v1245 = vcvt.s32.f32 %v1229
  %v1246 = vcvt.s32.f32 %v1230
  %v1247 = vcvt.s32.f32 %v1231
  %v1248 = vmul.f32 %v1232, 2.0
  %v1249 = vmul.f32 %v1233, 2.0
  %v1250 = vmul.f32 %v1234, 2.0
  %v1251 = vmul.f32 %v1235, 2.0
  %v1252 = vmul.f32 %v1236, 2.0
  %v1253 = vmul.f32 %v1237, 2.0
  %v1254 = vmul.f32 %v1238, 2.0
  %v1255 = vmul.f32 %v1239, 2.0
  %v1256 = vmul.f32 %v1240, 2.0
  %v1257 = vmul.f32 %v1241, 2.0
  %v1258 = vmul.f32 %v1242, 2.0
  %v1259 = vmul.f32 %v1243, 2.0
  %v1260 = vmul.f32 %v1244, 2.0
  %v1261 = vmul.f32 %v1245, 2.0
  %v1262 = vmul.f32 %v1246, 2.0
  %v1263 = vmul.f32 %v1247, 2.0
  %v1264 = vsub.f32 1.0, %v1248
  %v1265 = vsub.f32 1.0, %v1249
  %v1266 = vsub.f32 1.0, %v1250
  %v1267 = vsub.f32 1.0, %v1251
  %v1268 = vsub.f32 1.0, %v1252
  %v1269 = vsub.f32 1.0, %v1253
  %v1270 = vsub.f32 1.0, %v1254
  %v1271 = vsub.f32 1.0, %v1255
  %v1272 = vsub.f32 1.0, %v1256
  %v1273 = vsub.f32 1.0, %v1257
  %v1274 = vsub.f32 1.0, %v1258
  %v1275 = vsub.f32 1.0, %v1259
  %v1276 = vsub.f32 1.0, %v1260
  %v1277 = vsub.f32 1.0, %v1261
  %v1278 = vsub.f32 1.0, %v1262
  %v1279 = vsub.f32 1.0, %v1263
  %v1280 = vmul.f32 %v1184, %v1264
  %v1281 = vmul.f32 %v1185, %v1265
  %v1282 = vmul.f32 %v1186, %v1266
  %v1283 = vmul.f32 %v1187, %v1267
  %v1284 = vmul.f32 %v1188, %v1268
  %v1285 = vmul.f32 %v1189, %v1269
  %v1286 = vmul.f32 %v1190, %v1270
  %v1287 = vmul.f32 %v1191, %v1271
  %v1288 = vmul.f32 %v1192, %v1272
  %v1289 = vmul.f32 %v1193, %v1273
  %v1290 = vmul.f32 %v1194, %v1274
  %v1291 = vmul.f32 %v1195, %v1275
  %v1292 = vmul.f32 %v1196, %v1276
  %v1293 = vmul.f32 %v1197, %v1277
  %v1294 = vmul.f32 %v1198, %v1278
  %v1295 = vmul.f32 %v1199, %v1279
  %v1296 = vmul.f32 %v1280, %v1280
  %v1297 = vmul.f32 %v1281, %v1281
  %v1298 = vmul.f32 %v1282, %v1282
  %v1299 = vmul.f32 %v1283, %v1283
  %v1300 = vmul.f32 %v1284, %v1284
  %v1301 = vmul.f32 %v1285, %v1285
  %v1302 = vmul.f32 %v1286, %v1286
  %v1303 = vmul.f32 %v1287, %v1287
  %v1304 = vmul.f32 %v1288, %v1288
  %v1305 = vmul.f32 %v1289, %v1289
  %v1306 = vmul.f32 %v1290, %v1290
  %v1307 = vmul.f32 %v1291, %v1291
  %v1308 = vmul.f32 %v1292, %v1292
  %v1309 = vmul.f32 %v1293, %v1293
  %v1310 = vmul.f32 %v1294, %v1294
  %v1311 = vmul.f32 %v1295, %v1295
  %v1312 = vmul.f32 %v1296, 2.7557319e-06
  %v1313 = vmul.f32 %v1297, 2.7557319e-06
  %v1314 = vmul.f32 %v1298, 2.7557319e-06
  %v1315 = vmul.f32 %v1299, 2.7557319e-06
  %v1316 = vmul.f32 %v1300, 2.7557319e-06
  %v1317 = vmul.f32 %v1301, 2.7557319e-06
  %v1318 = vmul.f32 %v1302, 2.7557319e-06
  %v1319 = vmul.f32 %v1303, 2.7557319e-06
  %v1320 = vmul.f32 %v1304, 2.7557319e-06
  %v1321 = vmul.f32 %v1305, 2.7557319e-06
  %v1322 = vmul.f32 %v1306, 2.7557319e-06
  %v1323 = vmul.f32 %v1307, 2.7557319e-06
  %v1324 = vmul.f32 %v1308, 2.7557319e-06
  %v1325 = vmul.f32 %v1309, 2.7557319e-06
  %v1326 = vmul.f32 %v1310, 2.7557319e-06
  %v1327 = vmul.f32 %v1311, 2.7557319e-06
  %v1328 = vadd.f32 %v1312, -0.0001984127
  %v1329 = vadd.f32 %v1313, -0.0001984127
  %v1330 = vadd.f32 %v1314, -0.0001984127
  %v1331 = vadd.f32 %v1315, -0.0001984127
  %v1332 = vadd.f32 %v1316, -0.0001984127
  %v1333 = vadd.f32 %v1317, -0.0001984127
  %v1334 = vadd.f32 %v1318, -0.0001984127
  %v1335 = vadd.f32 %v1319, -0.0001984127
  %v1336 = vadd.f32 %v1320, -0.0001984127
  %v1337 = vadd.f32 %v1321, -0.0001984127
  %v1338 = vadd.f32 %v1322, -0.0001984127
  %v1339 = vadd.f32 %v1323, -0.0001984127
  %v1340 = vadd.f32 %v1324, -0.0001984127
  %v1341 = vadd.f32 %v1325, -0.0001984127
  %v1342 = vadd.f32 %v1326, -0.0001984127
  %v1343 = vadd.f32 %v1327, -0.0001984127
  %v1344 = vmul.f32 %v1296, %v1328
  %v1345 = vmul.f32 %v1297, %v1329
  %v1346 = vmul.f32 %v1298, %v1330
  %v1347 = vmul.f32 %v1299, %v1331
  %v1348 = vmul.f32 %v1300, %v1332
  %v1349 = vmul.f32 %v1301, %v1333
  %v1350 = vmul.f32 %v1302, %v1334
  %v1351 = vmul.f32 %v1303, %v1335
  %v1352 = vmul.f32 %v1304, %v1336
  %v1353 = vmul.f32 %v1305, %v1337
  %v1354 = vmul.f32 %v1306, %v1338
  %v1355 = vmul.f32 %v1307, %v1339
  %v1356 = vmul.f32 %v1308, %v1340
  %v1357 = vmul.f32 %v1309, %v1341
  %v1358 = vmul.f32 %v1310, %v1342
  %v1359 = vmul.f32 %v1311, %v1343
  %v1360 = vadd.f32 %v1344, 0.008333334
  %v1361 = vadd.f32 %v1345, 0.008333334
  %v1362 = vadd.f32 %v1346, 0.008333334
  %v1363 = vadd.f32 %v1347, 0.008333334
  %v1364 = vadd.f32 %v1348, 0.008333334
  %v1365 = vadd.f32 %v1349, 0.008333334
  %v1366 = vadd.f32 %v1350, 0.008333334
  %v1367 = vadd.f32 %v1351, 0.008333334
  %v1368 = vadd.f32 %v1352, 0.008333334
  %v1369 = vadd.f32 %v1353, 0.008333334
  %v1370 = vadd.f32 %v1354, 0.008333334
  %v1371 = vadd.f32 %v1355, 0.008333334
  %v1372 = vadd.f32 %v1356, 0.008333334
  %v1373 = vadd.f32 %v1357, 0.008333334
  %v1374 = vadd.f32 %v1358, 0.008333334
  %v1375 = vadd.f32 %v1359, 0.008333334
  %v1376 = vmul.f32 %v1296, %v1360
  %v1377 = vmul.f32 %v1297, %v1361
  %v1378 = vmul.f32 %v1298, %v1362
  %v1379 = vmul.f32 %v1299, %v1363
  %v1380 = vmul.f32 %v1300, %v1364
  %v1381 = vmul.f32 %v1301, %v1365
  %v1382 = vmul.f32 %v1302, %v1366
  %v1383 = vmul.f32 %v1303, %v1367
  %v1384 = vmul.f32 %v1304, %v1368
  %v1385 = vmul.f32 %v1305, %v1369
  %v1386 = vmul.f32 %v1306, %v1370
  %v1387 = vmul.f32 %v1307, %v1371
  %v1388 = vmul.f32 %v1308, %v1372
  %v1389 = vmul.f32 %v1309, %v1373
  %v1390 = vmul.f32 %v1310, %v1374
  %v1391 = vmul.f32 %v1311, %v1375
  %v1392 = vadd.f32 %v1376, -0.16666667
  %v1393 = vadd.f32 %v1377, -0.16666667
  %v1394 = vadd.f32 %v1378, -0.16666667
  %v1395 = vadd.f32 %v1379, -0.16666667
  %v1396 = vadd.f32 %v1380, -0.16666667
  %v1397 = vadd.f32 %v1381, -0.16666667
  %v1398 = vadd.f32 %v1382, -0.16666667
  %v1399 = vadd.f32 %v1383, -0.16666667
  %v1400 = vadd.f32 %v1384, -0.16666667
  %v1401 = vadd.f32 %v1385, -0.16666667
  %v1402 = vadd.f32 %v1386, -0.16666667
  %v1403 = vadd.f32 %v1387, -0.16666667
  %v1404 = vadd.f32 %v1388, -0.16666667
  %v1405 = vadd.f32 %v1389, -0.16666667
  %v1406 = vadd.f32 %v1390, -0.16666667
  %v1407 = vadd.f32 %v1391, -0.16666667
  %v1408 = vmul.f32 %v1296, %v1392
  %v1409 = vmul.f32 %v1297, %v1393
  %v1410 = vmul.f32 %v1298, %v1394
  %v1411 = vmul.f32 %v1299, %v1395
  %v1412 = vmul.f32 %v1300, %v1396
  %v1413 = vmul.f32 %v1301, %v1397
  %v1414 = vmul.f32 %v1302, %v1398
  %v1415 = vmul.f32 %v1303, %v1399
  %v1416 = vmul.f32 %v1304, %v1400
  %v1417 = vmul.f32 %v1305, %v1401
  %v1418 = vmul.f32 %v1306, %v1402
  %v1419 = vmul.f32 %v1307, %v1403
  %v1420 = vmul.f32 %v1308, %v1404
  %v1421 = vmul.f32 %v1309, %v1405
  %v1422 = vmul.f32 %v1310, %v1406
  %v1423 = vmul.f32 %v1311, %v1407
  %v1424 = vadd.f32 %v1408, 1.0
  %v1425 = vadd.f32 %v1409, 1.0
  %v1426 = vadd.f32 %v1410, 1.0
  %v1427 = vadd.f32 %v1411, 1.0
  %v1428 = vadd.f32 %v1412, 1.0
  %v1429 = vadd.f32 %v1413, 1.0
  %v1430 = vadd.f32 %v1414, 1.0
  %v1431 = vadd.f32 %v1415, 1.0
  %v1432 = vadd.f32 %v1416, 1.0
  %v1433 = vadd.f32 %v1417, 1.0
  %v1434 = vadd.f32 %v1418, 1.0
  %v1435 = vadd.f32 %v1419, 1.0
  %v1436 = vadd.f32 %v1420, 1.0
  %v1437 = vadd.f32 %v1421, 1.0
  %v1438 = vadd.f32 %v1422, 1.0
  %v1439 = vadd.f32 %v1423, 1.0
  %v1440 = vmul.f32 %v1280, %v1424
  %v1441 = vmul.f32 %v1281, %v1425
  %v1442 = vmul.f32 %v1282, %v1426
  %v1443 = vmul.f32 %v1283, %v1427
  %v1444 = vmul.f32 %v1284, %v1428
  %v1445 = vmul.f32 %v1285, %v1429
  %v1446 = vmul.f32 %v1286, %v1430
  %v1447 = vmul.f32 %v1287, %v1431
  %v1448 = vmul.f32 %v1288, %v1432
  %v1449 = vmul.f32 %v1289, %v1433
  %v1450 = vmul.f32 %v1290, %v1434
  %v1451 = vmul.f32 %v1291, %v1435
  %v1452 = vmul.f32 %v1292, %v1436
  %v1453 = vmul.f32 %v1293, %v1437
  %v1454 = vmul.f32 %v1294, %v1438
  %v1455 = vmul.f32 %v1295, %v1439
  %s1456 = scalar_lea.vmem %s3, 32
  %v1457 = vld [vmem:[%s1456] sm:$0xff]
  %v1458 = vld [vmem:[%s1456 + $0x8] sm:$0xff]
  %v1459 = vld [vmem:[%s1456 + $0x10] sm:$0xff]
  %v1460 = vld [vmem:[%s1456 + $0x18] sm:$0xff]
  %s1461 = scalar_lea.vmem %s4, 32
  %v1462 = vld [vmem:[%s1461] sm:$0xff]
  %v1463 = vld [vmem:[%s1461 + $0x8] sm:$0xff]
  %v1464 = vld [vmem:[%s1461 + $0x10] sm:$0xff]
  %v1465 = vld [vmem:[%s1461 + $0x18] sm:$0xff]
  %1467 = vset.pattern.permute.xlu0 0
  %1468 = vperm.xlu0 %1467, %v1462
  %v1469 = vpop.permute.xlu0 %1468
  %1472 = vset.pattern.permute.xlu0 0
  %1473 = vperm.xlu0 %1472, %v1463
  %v1474 = vpop.permute.xlu0 %1473
  %1477 = vset.pattern.permute.xlu0 0
  %1478 = vperm.xlu0 %1477, %v1464
  %v1479 = vpop.permute.xlu0 %1478
  %1482 = vset.pattern.permute.xlu0 0
  %1483 = vperm.xlu0 %1482, %v1465
  %v1484 = vpop.permute.xlu0 %1483
  %v1487 = vsel %vm897, %v1457, 0
  %v1490 = vsel %vm897, %v1458, 0
  %v1493 = vsel %vm897, %v1459, 0
  %v1496 = vsel %vm897, %v1460, 0
  %1498 = vmatprep.subr.mxu0 %v1441
  %1499 = vmatpush1.msra.mxu0 %v1440
  %1500 = vmatprep.subr.mxu0 %v1445
  %1501 = vmatpush1.msra.mxu0 %v1444
  %1502 = vmatprep.subr.mxu0 %v1449
  %1503 = vmatpush1.msra.mxu0 %v1448
  %1504 = vmatprep.subr.mxu0 %v1453
  %1505 = vmatpush1.msra.mxu0 %v1452
  %1506 = vmatprep.subr.mxu0 0.0
  %1507 = vmatpush1.msra.mxu0 0.0
  %1508 = vmatprep.subr.mxu0 0.0
  %1509 = vmatpush1.msra.mxu0 0.0
  %1510 = vmatprep.subr.mxu0 0.0
  %1511 = vmatpush1.msra.mxu0 0.0
  %1512 = vmatprep.subr.mxu0 0.0
  %1513 = vmatpush1.msra.mxu0 0.0
  %1514 = vmatprep.subr.mxu0 0.0
  %1515 = vmatpush1.msra.mxu0 0.0
  %1516 = vmatprep.subr.mxu0 0.0
  %1517 = vmatpush1.msra.mxu0 0.0
  %1518 = vmatprep.subr.mxu0 0.0
  %1519 = vmatpush1.msra.mxu0 0.0
  %1520 = vmatprep.subr.mxu0 0.0
  %1521 = vmatpush1.msra.mxu0 0.0
  %1522 = vmatprep.subr.mxu0 0.0
  %1523 = vmatpush1.msra.mxu0 0.0
  %1524 = vmatprep.subr.mxu0 0.0
  %1525 = vmatpush1.msra.mxu0 0.0
  %1526 = vmatprep.subr.mxu0 0.0
  %1527 = vmatpush1.msra.mxu0 0.0
  %1528 = vmatprep.subr.mxu0 0.0
  %1529 = vmatpush1.msra.mxu0 0.0
  %1530 = vmatprep.subr.mxu0 0.0
  %1531 = vmatpush1.msra.mxu0 0.0
  %1532 = vmatprep.subr.mxu0 0.0
  %1533 = vmatpush1.msra.mxu0 0.0
  %1534 = vmatprep.subr.mxu0 0.0
  %1535 = vmatpush1.msra.mxu0 0.0
  %1536 = vmatprep.subr.mxu0 0.0
  %1537 = vmatpush1.msra.mxu0 0.0
  %1538 = vmatprep.subr.mxu0 0.0
  %1539 = vmatpush1.msra.mxu0 0.0
  %1540 = vmatprep.subr.mxu0 0.0
  %1541 = vmatpush1.msra.mxu0 0.0
  %1542 = vmatprep.subr.mxu0 0.0
  %1543 = vmatpush1.msra.mxu0 0.0
  %1544 = vmatprep.subr.mxu0 0.0
  %1545 = vmatpush1.msra.mxu0 0.0
  %1546 = vmatprep.subr.mxu0 0.0
  %1547 = vmatpush1.msra.mxu0 0.0
  %1548 = vmatprep.subr.mxu0 0.0
  %1549 = vmatpush1.msra.mxu0 0.0
  %1550 = vmatprep.subr.mxu0 0.0
  %1551 = vmatpush1.msra.mxu0 0.0
  %1552 = vmatprep.subr.mxu0 0.0
  %1553 = vmatpush1.msra.mxu0 0.0
  %1554 = vmatprep.subr.mxu0 0.0
  %1555 = vmatpush1.msra.mxu0 0.0
  %1556 = vmatprep.subr.mxu0 0.0
  %1557 = vmatpush1.msra.mxu0 0.0
  %1558 = vmatprep.subr.mxu0 0.0
  %1559 = vmatpush1.msra.mxu0 0.0
  %1560 = vmatprep.subr.mxu0 0.0
  %1561 = vmatpush1.msra.mxu0 0.0
  %1562 = vmatprep.mubr.f32.mxu0 0.0
  %1563 = vmatmul.mubr.f32.gmra.mrb[0].mxu0 %v1487
  %v1564 = vpop.f32.mrb[0].mxu0
  %v1565 = vadd.f32 %v1469, %v1564
  %v1566 = vpop.f32.mrb[0].mxu0
  %v1567 = vadd.f32 %v1469, %v1566
  %1568 = vmatprep.mubr.f32.mxu0 0.0
  %1569 = vmatmul.mubr.f32.gmra.mrb[0].mxu0 %v1490
  %v1570 = vpop.f32.mrb[0].mxu0
  %v1571 = vadd.f32 %v1474, %v1570
  %v1572 = vpop.f32.mrb[0].mxu0
  %v1573 = vadd.f32 %v1474, %v1572
  %1574 = vmatprep.mubr.f32.mxu0 0.0
  %1575 = vmatmul.mubr.f32.gmra.mrb[0].mxu0 %v1493
  %v1576 = vpop.f32.mrb[0].mxu0
  %v1577 = vadd.f32 %v1479, %v1576
  %v1578 = vpop.f32.mrb[0].mxu0
  %v1579 = vadd.f32 %v1479, %v1578
  %1580 = vmatprep.mubr.f32.mxu0 0.0
  %1581 = vmatmul.mubr.f32.gmra.mrb[0].mxu0 %v1496
  %v1582 = vpop.f32.mrb[0].mxu0
  %v1583 = vadd.f32 %v1484, %v1582
  %v1584 = vpop.f32.mrb[0].mxu0
  %v1585 = vadd.f32 %v1484, %v1584
  %1586 = vdwg.mxu0
  %1587 = vmatprep.subr.mxu0 %v1443
  %1588 = vmatpush1.msra.mxu0 %v1442
  %1589 = vmatprep.subr.mxu0 %v1447
  %1590 = vmatpush1.msra.mxu0 %v1446
  %1591 = vmatprep.subr.mxu0 %v1451
  %1592 = vmatpush1.msra.mxu0 %v1450
  %1593 = vmatprep.subr.mxu0 %v1455
  %1594 = vmatpush1.msra.mxu0 %v1454
  %1595 = vmatprep.subr.mxu0 0.0
  %1596 = vmatpush1.msra.mxu0 0.0
  %1597 = vmatprep.subr.mxu0 0.0
  %1598 = vmatpush1.msra.mxu0 0.0
  %1599 = vmatprep.subr.mxu0 0.0
  %1600 = vmatpush1.msra.mxu0 0.0
  %1601 = vmatprep.subr.mxu0 0.0
  %1602 = vmatpush1.msra.mxu0 0.0
  %1603 = vmatprep.subr.mxu0 0.0
  %1604 = vmatpush1.msra.mxu0 0.0
  %1605 = vmatprep.subr.mxu0 0.0
  %1606 = vmatpush1.msra.mxu0 0.0
  %1607 = vmatprep.subr.mxu0 0.0
  %1608 = vmatpush1.msra.mxu0 0.0
  %1609 = vmatprep.subr.mxu0 0.0
  %1610 = vmatpush1.msra.mxu0 0.0
  %1611 = vmatprep.subr.mxu0 0.0
  %1612 = vmatpush1.msra.mxu0 0.0
  %1613 = vmatprep.subr.mxu0 0.0
  %1614 = vmatpush1.msra.mxu0 0.0
  %1615 = vmatprep.subr.mxu0 0.0
  %1616 = vmatpush1.msra.mxu0 0.0
  %1617 = vmatprep.subr.mxu0 0.0
  %1618 = vmatpush1.msra.mxu0 0.0
  %1619 = vmatprep.subr.mxu0 0.0
  %1620 = vmatpush1.msra.mxu0 0.0
  %1621 = vmatprep.subr.mxu0 0.0
  %1622 = vmatpush1.msra.mxu0 0.0
  %1623 = vmatprep.subr.mxu0 0.0
  %1624 = vmatpush1.msra.mxu0 0.0
  %1625 = vmatprep.subr.mxu0 0.0
  %1626 = vmatpush1.msra.mxu0 0.0
  %1627 = vmatprep.subr.mxu0 0.0
  %1628 = vmatpush1.msra.mxu0 0.0
  %1629 = vmatprep.subr.mxu0 0.0
  %1630 = vmatpush1.msra.mxu0 0.0
  %1631 = vmatprep.subr.mxu0 0.0
  %1632 = vmatpush1.msra.mxu0 0.0
  %1633 = vmatprep.subr.mxu0 0.0
  %1634 = vmatpush1.msra.mxu0 0.0
  %1635 = vmatprep.subr.mxu0 0.0
  %1636 = vmatpush1.msra.mxu0 0.0
  %1637 = vmatprep.subr.mxu0 0.0
  %1638 = vmatpush1.msra.mxu0 0.0
  %1639 = vmatprep.subr.mxu0 0.0
  %1640 = vmatpush1.msra.mxu0 0.0
  %1641 = vmatprep.subr.mxu0 0.0
  %1642 = vmatpush1.msra.mxu0 0.0
  %1643 = vmatprep.subr.mxu0 0.0
  %1644 = vmatpush1.msra.mxu0 0.0
  %1645 = vmatprep.subr.mxu0 0.0
  %1646 = vmatpush1.msra.mxu0 0.0
  %1647 = vmatprep.subr.mxu0 0.0
  %1648 = vmatpush1.msra.mxu0 0.0
  %1649 = vmatprep.subr.mxu0 0.0
  %1650 = vmatpush1.msra.mxu0 0.0
  %1651 = vmatprep.mubr.f32.mxu0 0.0
  %1652 = vmatmul.mubr.f32.gmra.mrb[0].mxu0 %v1487
  %v1653 = vpop.f32.mrb[0].mxu0
  %v1654 = vadd.f32 %v1469, %v1653
  %v1655 = vpop.f32.mrb[0].mxu0
  %v1656 = vadd.f32 %v1469, %v1655
  %1657 = vmatprep.mubr.f32.mxu0 0.0
  %1658 = vmatmul.mubr.f32.gmra.mrb[0].mxu0 %v1490
  %v1659 = vpop.f32.mrb[0].mxu0
  %v1660 = vadd.f32 %v1474, %v1659
  %v1661 = vpop.f32.mrb[0].mxu0
  %v1662 = vadd.f32 %v1474, %v1661
  %1663 = vmatprep.mubr.f32.mxu0 0.0
  %1664 = vmatmul.mubr.f32.gmra.mrb[0].mxu0 %v1493
  %v1665 = vpop.f32.mrb[0].mxu0
  %v1666 = vadd.f32 %v1479, %v1665
  %v1667 = vpop.f32.mrb[0].mxu0
  %v1668 = vadd.f32 %v1479, %v1667
  %1669 = vmatprep.mubr.f32.mxu0 0.0
  %1670 = vmatmul.mubr.f32.gmra.mrb[0].mxu0 %v1496
  %v1671 = vpop.f32.mrb[0].mxu0
  %v1672 = vadd.f32 %v1484, %v1671
  %v1673 = vpop.f32.mrb[0].mxu0
  %v1674 = vadd.f32 %v1484, %v1673
  %1675 = vdwg.mxu0
  %v1676 = vmul.f32 %v1565, 0.31830987
  %v1677 = vmul.f32 %v1567, 0.31830987
  %v1678 = vmul.f32 %v1654, 0.31830987
  %v1679 = vmul.f32 %v1656, 0.31830987
  %v1680 = vmul.f32 %v1571, 0.31830987
  %v1681 = vmul.f32 %v1573, 0.31830987
  %v1682 = vmul.f32 %v1660, 0.31830987
  %v1683 = vmul.f32 %v1662, 0.31830987
  %v1684 = vmul.f32 %v1577, 0.31830987
  %v1685 = vmul.f32 %v1579, 0.31830987
  %v1686 = vmul.f32 %v1666, 0.31830987
  %v1687 = vmul.f32 %v1668, 0.31830987
  %v1688 = vmul.f32 %v1583, 0.31830987
  %v1689 = vmul.f32 %v1585, 0.31830987
  %v1690 = vmul.f32 %v1672, 0.31830987
  %v1691 = vmul.f32 %v1674, 0.31830987
  %v1692 = vadd.f32 %v1676, 0.5
  %v1693 = vadd.f32 %v1677, 0.5
  %v1694 = vadd.f32 %v1678, 0.5
  %v1695 = vadd.f32 %v1679, 0.5
  %v1696 = vadd.f32 %v1680, 0.5
  %v1697 = vadd.f32 %v1681, 0.5
  %v1698 = vadd.f32 %v1682, 0.5
  %v1699 = vadd.f32 %v1683, 0.5
  %v1700 = vadd.f32 %v1684, 0.5
  %v1701 = vadd.f32 %v1685, 0.5
  %v1702 = vadd.f32 %v1686, 0.5
  %v1703 = vadd.f32 %v1687, 0.5
  %v1704 = vadd.f32 %v1688, 0.5
  %v1705 = vadd.f32 %v1689, 0.5
  %v1706 = vadd.f32 %v1690, 0.5
  %v1707 = vadd.f32 %v1691, 0.5
  %v1708 = vfloor.f32 %v1692
  %v1709 = vfloor.f32 %v1693
  %v1710 = vfloor.f32 %v1694
  %v1711 = vfloor.f32 %v1695
  %v1712 = vfloor.f32 %v1696
  %v1713 = vfloor.f32 %v1697
  %v1714 = vfloor.f32 %v1698
  %v1715 = vfloor.f32 %v1699
  %v1716 = vfloor.f32 %v1700
  %v1717 = vfloor.f32 %v1701
  %v1718 = vfloor.f32 %v1702
  %v1719 = vfloor.f32 %v1703
  %v1720 = vfloor.f32 %v1704
  %v1721 = vfloor.f32 %v1705
  %v1722 = vfloor.f32 %v1706
  %v1723 = vfloor.f32 %v1707
  %v1724 = vmul.f32 %v1708, 3.140625
  %v1725 = vmul.f32 %v1709, 3.140625
  %v1726 = vmul.f32 %v1710, 3.140625
  %v1727 = vmul.f32 %v1711, 3.140625
  %v1728 = vmul.f32 %v1712, 3.140625
  %v1729 = vmul.f32 %v1713, 3.140625
  %v1730 = vmul.f32 %v1714, 3.140625
  %v1731 = vmul.f32 %v1715, 3.140625
  %v1732 = vmul.f32 %v1716, 3.140625
  %v1733 = vmul.f32 %v1717, 3.140625
  %v1734 = vmul.f32 %v1718, 3.140625
  %v1735 = vmul.f32 %v1719, 3.140625
  %v1736 = vmul.f32 %v1720, 3.140625
  %v1737 = vmul.f32 %v1721, 3.140625
  %v1738 = vmul.f32 %v1722, 3.140625
  %v1739 = vmul.f32 %v1723, 3.140625
  %v1740 = vsub.f32 %v1565, %v1724
  %v1741 = vsub.f32 %v1567, %v1725
  %v1742 = vsub.f32 %v1654, %v1726
  %v1743 = vsub.f32 %v1656, %v1727
  %v1744 = vsub.f32 %v1571, %v1728
  %v1745 = vsub.f32 %v1573, %v1729
  %v1746 = vsub.f32 %v1660, %v1730
  %v1747 = vsub.f32 %v1662, %v1731
  %v1748 = vsub.f32 %v1577, %v1732
  %v1749 = vsub.f32 %v1579, %v1733
  %v1750 = vsub.f32 %v1666, %v1734
  %v1751 = vsub.f32 %v1668, %v1735
  %v1752 = vsub.f32 %v1583, %v1736
  %v1753 = vsub.f32 %v1585, %v1737
  %v1754 = vsub.f32 %v1672, %v1738
  %v1755 = vsub.f32 %v1674, %v1739
  %v1756 = vmul.f32 %v1708, 0.0009676536
  %v1757 = vmul.f32 %v1709, 0.0009676536
  %v1758 = vmul.f32 %v1710, 0.0009676536
  %v1759 = vmul.f32 %v1711, 0.0009676536
  %v1760 = vmul.f32 %v1712, 0.0009676536
  %v1761 = vmul.f32 %v1713, 0.0009676536
  %v1762 = vmul.f32 %v1714, 0.0009676536
  %v1763 = vmul.f32 %v1715, 0.0009676536
  %v1764 = vmul.f32 %v1716, 0.0009676536
  %v1765 = vmul.f32 %v1717, 0.0009676536
  %v1766 = vmul.f32 %v1718, 0.0009676536
  %v1767 = vmul.f32 %v1719, 0.0009676536
  %v1768 = vmul.f32 %v1720, 0.0009676536
  %v1769 = vmul.f32 %v1721, 0.0009676536
  %v1770 = vmul.f32 %v1722, 0.0009676536
  %v1771 = vmul.f32 %v1723, 0.0009676536
  %v1772 = vsub.f32 %v1740, %v1756
  %v1773 = vsub.f32 %v1741, %v1757
  %v1774 = vsub.f32 %v1742, %v1758
  %v1775 = vsub.f32 %v1743, %v1759
  %v1776 = vsub.f32 %v1744, %v1760
  %v1777 = vsub.f32 %v1745, %v1761
  %v1778 = vsub.f32 %v1746, %v1762
  %v1779 = vsub.f32 %v1747, %v1763
  %v1780 = vsub.f32 %v1748, %v1764
  %v1781 = vsub.f32 %v1749, %v1765
  %v1782 = vsub.f32 %v1750, %v1766
  %v1783 = vsub.f32 %v1751, %v1767
  %v1784 = vsub.f32 %v1752, %v1768
  %v1785 = vsub.f32 %v1753, %v1769
  %v1786 = vsub.f32 %v1754, %v1770
  %v1787 = vsub.f32 %v1755, %v1771
  %v1788 = vcvt.f32.s32.to.zero.pseudo %v1708
  %v1789 = vcvt.f32.s32.to.zero.pseudo %v1709
  %v1790 = vcvt.f32.s32.to.zero.pseudo %v1710
  %v1791 = vcvt.f32.s32.to.zero.pseudo %v1711
  %v1792 = vcvt.f32.s32.to.zero.pseudo %v1712
  %v1793 = vcvt.f32.s32.to.zero.pseudo %v1713
  %v1794 = vcvt.f32.s32.to.zero.pseudo %v1714
  %v1795 = vcvt.f32.s32.to.zero.pseudo %v1715
  %v1796 = vcvt.f32.s32.to.zero.pseudo %v1716
  %v1797 = vcvt.f32.s32.to.zero.pseudo %v1717
  %v1798 = vcvt.f32.s32.to.zero.pseudo %v1718
  %v1799 = vcvt.f32.s32.to.zero.pseudo %v1719
  %v1800 = vcvt.f32.s32.to.zero.pseudo %v1720
  %v1801 = vcvt.f32.s32.to.zero.pseudo %v1721
  %v1802 = vcvt.f32.s32.to.zero.pseudo %v1722
  %v1803 = vcvt.f32.s32.to.zero.pseudo %v1723
  %v1804 = vand.u32 %v1788, 1
  %v1805 = vand.u32 %v1789, 1
  %v1806 = vand.u32 %v1790, 1
  %v1807 = vand.u32 %v1791, 1
  %v1808 = vand.u32 %v1792, 1
  %v1809 = vand.u32 %v1793, 1
  %v1810 = vand.u32 %v1794, 1
  %v1811 = vand.u32 %v1795, 1
  %v1812 = vand.u32 %v1796, 1
  %v1813 = vand.u32 %v1797, 1
  %v1814 = vand.u32 %v1798, 1
  %v1815 = vand.u32 %v1799, 1
  %v1816 = vand.u32 %v1800, 1
  %v1817 = vand.u32 %v1801, 1
  %v1818 = vand.u32 %v1802, 1
  %v1819 = vand.u32 %v1803, 1
  %v1820 = vcvt.s32.f32 %v1804
  %v1821 = vcvt.s32.f32 %v1805
  %v1822 = vcvt.s32.f32 %v1806
  %v1823 = vcvt.s32.f32 %v1807
  %v1824 = vcvt.s32.f32 %v1808
  %v1825 = vcvt.s32.f32 %v1809
  %v1826 = vcvt.s32.f32 %v1810
  %v1827 = vcvt.s32.f32 %v1811
  %v1828 = vcvt.s32.f32 %v1812
  %v1829 = vcvt.s32.f32 %v1813
  %v1830 = vcvt.s32.f32 %v1814
  %v1831 = vcvt.s32.f32 %v1815
  %v1832 = vcvt.s32.f32 %v1816
  %v1833 = vcvt.s32.f32 %v1817
  %v1834 = vcvt.s32.f32 %v1818
  %v1835 = vcvt.s32.f32 %v1819
  %v1836 = vmul.f32 %v1820, 2.0
  %v1837 = vmul.f32 %v1821, 2.0
  %v1838 = vmul.f32 %v1822, 2.0
  %v1839 = vmul.f32 %v1823, 2.0
  %v1840 = vmul.f32 %v1824, 2.0
  %v1841 = vmul.f32 %v1825, 2.0
  %v1842 = vmul.f32 %v1826, 2.0
  %v1843 = vmul.f32 %v1827, 2.0
  %v1844 = vmul.f32 %v1828, 2.0
  %v1845 = vmul.f32 %v1829, 2.0
  %v1846 = vmul.f32 %v1830, 2.0
  %v1847 = vmul.f32 %v1831, 2.0
  %v1848 = vmul.f32 %v1832, 2.0
  %v1849 = vmul.f32 %v1833, 2.0
  %v1850 = vmul.f32 %v1834, 2.0
  %v1851 = vmul.f32 %v1835, 2.0
  %v1852 = vsub.f32 1.0, %v1836
  %v1853 = vsub.f32 1.0, %v1837
  %v1854 = vsub.f32 1.0, %v1838
  %v1855 = vsub.f32 1.0, %v1839
  %v1856 = vsub.f32 1.0, %v1840
  %v1857 = vsub.f32 1.0, %v1841
  %v1858 = vsub.f32 1.0, %v1842
  %v1859 = vsub.f32 1.0, %v1843
  %v1860 = vsub.f32 1.0, %v1844
  %v1861 = vsub.f32 1.0, %v1845
  %v1862 = vsub.f32 1.0, %v1846
  %v1863 = vsub.f32 1.0, %v1847
  %v1864 = vsub.f32 1.0, %v1848
  %v1865 = vsub.f32 1.0, %v1849
  %v1866 = vsub.f32 1.0, %v1850
  %v1867 = vsub.f32 1.0, %v1851
  %v1868 = vmul.f32 %v1772, %v1852
  %v1869 = vmul.f32 %v1773, %v1853
  %v1870 = vmul.f32 %v1774, %v1854
  %v1871 = vmul.f32 %v1775, %v1855
  %v1872 = vmul.f32 %v1776, %v1856
  %v1873 = vmul.f32 %v1777, %v1857
  %v1874 = vmul.f32 %v1778, %v1858
  %v1875 = vmul.f32 %v1779, %v1859
  %v1876 = vmul.f32 %v1780, %v1860
  %v1877 = vmul.f32 %v1781, %v1861
  %v1878 = vmul.f32 %v1782, %v1862
  %v1879 = vmul.f32 %v1783, %v1863
  %v1880 = vmul.f32 %v1784, %v1864
  %v1881 = vmul.f32 %v1785, %v1865
  %v1882 = vmul.f32 %v1786, %v1866
  %v1883 = vmul.f32 %v1787, %v1867
  %v1884 = vmul.f32 %v1868, %v1868
  %v1885 = vmul.f32 %v1869, %v1869
  %v1886 = vmul.f32 %v1870, %v1870
  %v1887 = vmul.f32 %v1871, %v1871
  %v1888 = vmul.f32 %v1872, %v1872
  %v1889 = vmul.f32 %v1873, %v1873
  %v1890 = vmul.f32 %v1874, %v1874
  %v1891 = vmul.f32 %v1875, %v1875
  %v1892 = vmul.f32 %v1876, %v1876
  %v1893 = vmul.f32 %v1877, %v1877
  %v1894 = vmul.f32 %v1878, %v1878
  %v1895 = vmul.f32 %v1879, %v1879
  %v1896 = vmul.f32 %v1880, %v1880
  %v1897 = vmul.f32 %v1881, %v1881
  %v1898 = vmul.f32 %v1882, %v1882
  %v1899 = vmul.f32 %v1883, %v1883
  %v1900 = vmul.f32 %v1884, 2.7557319e-06
  %v1901 = vmul.f32 %v1885, 2.7557319e-06
  %v1902 = vmul.f32 %v1886, 2.7557319e-06
  %v1903 = vmul.f32 %v1887, 2.7557319e-06
  %v1904 = vmul.f32 %v1888, 2.7557319e-06
  %v1905 = vmul.f32 %v1889, 2.7557319e-06
  %v1906 = vmul.f32 %v1890, 2.7557319e-06
  %v1907 = vmul.f32 %v1891, 2.7557319e-06
  %v1908 = vmul.f32 %v1892, 2.7557319e-06
  %v1909 = vmul.f32 %v1893, 2.7557319e-06
  %v1910 = vmul.f32 %v1894, 2.7557319e-06
  %v1911 = vmul.f32 %v1895, 2.7557319e-06
  %v1912 = vmul.f32 %v1896, 2.7557319e-06
  %v1913 = vmul.f32 %v1897, 2.7557319e-06
  %v1914 = vmul.f32 %v1898, 2.7557319e-06
  %v1915 = vmul.f32 %v1899, 2.7557319e-06
  %v1916 = vadd.f32 %v1900, -0.0001984127
  %v1917 = vadd.f32 %v1901, -0.0001984127
  %v1918 = vadd.f32 %v1902, -0.0001984127
  %v1919 = vadd.f32 %v1903, -0.0001984127
  %v1920 = vadd.f32 %v1904, -0.0001984127
  %v1921 = vadd.f32 %v1905, -0.0001984127
  %v1922 = vadd.f32 %v1906, -0.0001984127
  %v1923 = vadd.f32 %v1907, -0.0001984127
  %v1924 = vadd.f32 %v1908, -0.0001984127
  %v1925 = vadd.f32 %v1909, -0.0001984127
  %v1926 = vadd.f32 %v1910, -0.0001984127
  %v1927 = vadd.f32 %v1911, -0.0001984127
  %v1928 = vadd.f32 %v1912, -0.0001984127
  %v1929 = vadd.f32 %v1913, -0.0001984127
  %v1930 = vadd.f32 %v1914, -0.0001984127
  %v1931 = vadd.f32 %v1915, -0.0001984127
  %v1932 = vmul.f32 %v1884, %v1916
  %v1933 = vmul.f32 %v1885, %v1917
  %v1934 = vmul.f32 %v1886, %v1918
  %v1935 = vmul.f32 %v1887, %v1919
  %v1936 = vmul.f32 %v1888, %v1920
  %v1937 = vmul.f32 %v1889, %v1921
  %v1938 = vmul.f32 %v1890, %v1922
  %v1939 = vmul.f32 %v1891, %v1923
  %v1940 = vmul.f32 %v1892, %v1924
  %v1941 = vmul.f32 %v1893, %v1925
  %v1942 = vmul.f32 %v1894, %v1926
  %v1943 = vmul.f32 %v1895, %v1927
  %v1944 = vmul.f32 %v1896, %v1928
  %v1945 = vmul.f32 %v1897, %v1929
  %v1946 = vmul.f32 %v1898, %v1930
  %v1947 = vmul.f32 %v1899, %v1931
  %v1948 = vadd.f32 %v1932, 0.008333334
  %v1949 = vadd.f32 %v1933, 0.008333334
  %v1950 = vadd.f32 %v1934, 0.008333334
  %v1951 = vadd.f32 %v1935, 0.008333334
  %v1952 = vadd.f32 %v1936, 0.008333334
  %v1953 = vadd.f32 %v1937, 0.008333334
  %v1954 = vadd.f32 %v1938, 0.008333334
  %v1955 = vadd.f32 %v1939, 0.008333334
  %v1956 = vadd.f32 %v1940, 0.008333334
  %v1957 = vadd.f32 %v1941, 0.008333334
  %v1958 = vadd.f32 %v1942, 0.008333334
  %v1959 = vadd.f32 %v1943, 0.008333334
  %v1960 = vadd.f32 %v1944, 0.008333334
  %v1961 = vadd.f32 %v1945, 0.008333334
  %v1962 = vadd.f32 %v1946, 0.008333334
  %v1963 = vadd.f32 %v1947, 0.008333334
  %v1964 = vmul.f32 %v1884, %v1948
  %v1965 = vmul.f32 %v1885, %v1949
  %v1966 = vmul.f32 %v1886, %v1950
  %v1967 = vmul.f32 %v1887, %v1951
  %v1968 = vmul.f32 %v1888, %v1952
  %v1969 = vmul.f32 %v1889, %v1953
  %v1970 = vmul.f32 %v1890, %v1954
  %v1971 = vmul.f32 %v1891, %v1955
  %v1972 = vmul.f32 %v1892, %v1956
  %v1973 = vmul.f32 %v1893, %v1957
  %v1974 = vmul.f32 %v1894, %v1958
  %v1975 = vmul.f32 %v1895, %v1959
  %v1976 = vmul.f32 %v1896, %v1960
  %v1977 = vmul.f32 %v1897, %v1961
  %v1978 = vmul.f32 %v1898, %v1962
  %v1979 = vmul.f32 %v1899, %v1963
  %v1980 = vadd.f32 %v1964, -0.16666667
  %v1981 = vadd.f32 %v1965, -0.16666667
  %v1982 = vadd.f32 %v1966, -0.16666667
  %v1983 = vadd.f32 %v1967, -0.16666667
  %v1984 = vadd.f32 %v1968, -0.16666667
  %v1985 = vadd.f32 %v1969, -0.16666667
  %v1986 = vadd.f32 %v1970, -0.16666667
  %v1987 = vadd.f32 %v1971, -0.16666667
  %v1988 = vadd.f32 %v1972, -0.16666667
  %v1989 = vadd.f32 %v1973, -0.16666667
  %v1990 = vadd.f32 %v1974, -0.16666667
  %v1991 = vadd.f32 %v1975, -0.16666667
  %v1992 = vadd.f32 %v1976, -0.16666667
  %v1993 = vadd.f32 %v1977, -0.16666667
  %v1994 = vadd.f32 %v1978, -0.16666667
  %v1995 = vadd.f32 %v1979, -0.16666667
  %v1996 = vmul.f32 %v1884, %v1980
  %v1997 = vmul.f32 %v1885, %v1981
  %v1998 = vmul.f32 %v1886, %v1982
  %v1999 = vmul.f32 %v1887, %v1983
  %v2000 = vmul.f32 %v1888, %v1984
  %v2001 = vmul.f32 %v1889, %v1985
  %v2002 = vmul.f32 %v1890, %v1986
  %v2003 = vmul.f32 %v1891, %v1987
  %v2004 = vmul.f32 %v1892, %v1988
  %v2005 = vmul.f32 %v1893, %v1989
  %v2006 = vmul.f32 %v1894, %v1990
  %v2007 = vmul.f32 %v1895, %v1991
  %v2008 = vmul.f32 %v1896, %v1992
  %v2009 = vmul.f32 %v1897, %v1993
  %v2010 = vmul.f32 %v1898, %v1994
  %v2011 = vmul.f32 %v1899, %v1995
  %v2012 = vadd.f32 %v1996, 1.0
  %v2013 = vadd.f32 %v1997, 1.0
  %v2014 = vadd.f32 %v1998, 1.0
  %v2015 = vadd.f32 %v1999, 1.0
  %v2016 = vadd.f32 %v2000, 1.0
  %v2017 = vadd.f32 %v2001, 1.0
  %v2018 = vadd.f32 %v2002, 1.0
  %v2019 = vadd.f32 %v2003, 1.0
  %v2020 = vadd.f32 %v2004, 1.0
  %v2021 = vadd.f32 %v2005, 1.0
  %v2022 = vadd.f32 %v2006, 1.0
  %v2023 = vadd.f32 %v2007, 1.0
  %v2024 = vadd.f32 %v2008, 1.0
  %v2025 = vadd.f32 %v2009, 1.0
  %v2026 = vadd.f32 %v2010, 1.0
  %v2027 = vadd.f32 %v2011, 1.0
  %v2028 = vmul.f32 %v1868, %v2012
  %v2029 = vmul.f32 %v1869, %v2013
  %v2030 = vmul.f32 %v1870, %v2014
  %v2031 = vmul.f32 %v1871, %v2015
  %v2032 = vmul.f32 %v1872, %v2016
  %v2033 = vmul.f32 %v1873, %v2017
  %v2034 = vmul.f32 %v1874, %v2018
  %v2035 = vmul.f32 %v1875, %v2019
  %v2036 = vmul.f32 %v1876, %v2020
  %v2037 = vmul.f32 %v1877, %v2021
  %v2038 = vmul.f32 %v1878, %v2022
  %v2039 = vmul.f32 %v1879, %v2023
  %v2040 = vmul.f32 %v1880, %v2024
  %v2041 = vmul.f32 %v1881, %v2025
  %v2042 = vmul.f32 %v1882, %v2026
  %v2043 = vmul.f32 %v1883, %v2027
  %v2044 = vld [vmem:[%s5] sm:$0xff]
  %v2045 = vld [vmem:[%s5 + $0x8] sm:$0xff]
  %v2046 = vld [vmem:[%s5 + $0x10] sm:$0xff]
  %v2047 = vld [vmem:[%s5 + $0x18] sm:$0xff]
  %v2048 = vld [vmem:[%s6] sm:$0x1]
  %v2050 = vlaneseq
  %v2051 = vshrl.u32 %v2050, 7
  %v2052 = vsub.s32 0, %v2051
  %v2053 = vrot.slane %v2048, %v2052
  %2055 = vxpose.xlu0.b32.start [1/16] %v2028, 128
  %2056 = vxpose.xlu0.b32.cont [2/16] %v2032, 128
  %2057 = vxpose.xlu0.b32.cont [3/16] %v2036, 128
  %2058 = vxpose.xlu0.b32.cont [4/16] %v2040, 128
  %2059 = vxpose.xlu0.b32.cont [5/16] 0.0, 128
  %2060 = vxpose.xlu0.b32.cont [6/16] 0.0, 128
  %2061 = vxpose.xlu0.b32.cont [7/16] 0.0, 128
  %2062 = vxpose.xlu0.b32.cont [8/16] 0.0, 128
  %2063 = vxpose.xlu0.b32.cont [9/16] 0.0, 128
  %2064 = vxpose.xlu0.b32.cont [10/16] 0.0, 128
  %2065 = vxpose.xlu0.b32.cont [11/16] 0.0, 128
  %2066 = vxpose.xlu0.b32.cont [12/16] 0.0, 128
  %2067 = vxpose.xlu0.b32.cont [13/16] 0.0, 128
  %2068 = vxpose.xlu0.b32.cont [14/16] 0.0, 128
  %2069 = vxpose.xlu0.b32.cont [15/16] 0.0, 128
  %2070 = vxpose.xlu0.b32.end [16/16] 0.0, 128
  %v2071 = vpop.trf.xlu0
  %v2072 = vpop.trf.xlu0
  %v2073 = vpop.trf.xlu0
  %v2074 = vpop.trf.xlu0
  %v2075 = vpop.trf.xlu0
  %v2076 = vpop.trf.xlu0
  %v2077 = vpop.trf.xlu0
  %v2078 = vpop.trf.xlu0
  %v2079 = vpop.trf.xlu0
  %v2080 = vpop.trf.xlu0
  %v2081 = vpop.trf.xlu0
  %v2082 = vpop.trf.xlu0
  %v2083 = vpop.trf.xlu0
  %v2084 = vpop.trf.xlu0
  %v2085 = vpop.trf.xlu0
  %v2086 = vpop.trf.xlu0
  %2087 = vxpose.xlu0.b32.start [1/16] %v2029, 128
  %2088 = vxpose.xlu0.b32.cont [2/16] %v2033, 128
  %2089 = vxpose.xlu0.b32.cont [3/16] %v2037, 128
  %2090 = vxpose.xlu0.b32.cont [4/16] %v2041, 128
  %2091 = vxpose.xlu0.b32.cont [5/16] 0.0, 128
  %2092 = vxpose.xlu0.b32.cont [6/16] 0.0, 128
  %2093 = vxpose.xlu0.b32.cont [7/16] 0.0, 128
  %2094 = vxpose.xlu0.b32.cont [8/16] 0.0, 128
  %2095 = vxpose.xlu0.b32.cont [9/16] 0.0, 128
  %2096 = vxpose.xlu0.b32.cont [10/16] 0.0, 128
  %2097 = vxpose.xlu0.b32.cont [11/16] 0.0, 128
  %2098 = vxpose.xlu0.b32.cont [12/16] 0.0, 128
  %2099 = vxpose.xlu0.b32.cont [13/16] 0.0, 128
  %2100 = vxpose.xlu0.b32.cont [14/16] 0.0, 128
  %2101 = vxpose.xlu0.b32.cont [15/16] 0.0, 128
  %2102 = vxpose.xlu0.b32.end [16/16] 0.0, 128
  %v2103 = vpop.trf.xlu0
  %v2104 = vpop.trf.xlu0
  %v2105 = vpop.trf.xlu0
  %v2106 = vpop.trf.xlu0
  %v2107 = vpop.trf.xlu0
  %v2108 = vpop.trf.xlu0
  %v2109 = vpop.trf.xlu0
  %v2110 = vpop.trf.xlu0
  %v2111 = vpop.trf.xlu0
  %v2112 = vpop.trf.xlu0
  %v2113 = vpop.trf.xlu0
  %v2114 = vpop.trf.xlu0
  %v2115 = vpop.trf.xlu0
  %v2116 = vpop.trf.xlu0
  %v2117 = vpop.trf.xlu0
  %v2118 = vpop.trf.xlu0
  %2119 = vxpose.xlu0.b32.start [1/16] %v2030, 128
  %2120 = vxpose.xlu0.b32.cont [2/16] %v2034, 128
  %2121 = vxpose.xlu0.b32.cont [3/16] %v2038, 128
  %2122 = vxpose.xlu0.b32.cont [4/16] %v2042, 128
  %2123 = vxpose.xlu0.b32.cont [5/16] 0.0, 128
  %2124 = vxpose.xlu0.b32.cont [6/16] 0.0, 128
  %2125 = vxpose.xlu0.b32.cont [7/16] 0.0, 128
  %2126 = vxpose.xlu0.b32.cont [8/16] 0.0, 128
  %2127 = vxpose.xlu0.b32.cont [9/16] 0.0, 128
  %2128 = vxpose.xlu0.b32.cont [10/16] 0.0, 128
  %2129 = vxpose.xlu0.b32.cont [11/16] 0.0, 128
  %2130 = vxpose.xlu0.b32.cont [12/16] 0.0, 128
  %2131 = vxpose.xlu0.b32.cont [13/16] 0.0, 128
  %2132 = vxpose.xlu0.b32.cont [14/16] 0.0, 128
  %2133 = vxpose.xlu0.b32.cont [15/16] 0.0, 128
  %2134 = vxpose.xlu0.b32.end [16/16] 0.0, 128
  %v2135 = vpop.trf.xlu0
  %v2136 = vpop.trf.xlu0
  %v2137 = vpop.trf.xlu0
  %v2138 = vpop.trf.xlu0
  %v2139 = vpop.trf.xlu0
  %v2140 = vpop.trf.xlu0
  %v2141 = vpop.trf.xlu0
  %v2142 = vpop.trf.xlu0
  %v2143 = vpop.trf.xlu0
  %v2144 = vpop.trf.xlu0
  %v2145 = vpop.trf.xlu0
  %v2146 = vpop.trf.xlu0
  %v2147 = vpop.trf.xlu0
  %v2148 = vpop.trf.xlu0
  %v2149 = vpop.trf.xlu0
  %v2150 = vpop.trf.xlu0
  %2151 = vxpose.xlu0.b32.start [1/16] %v2031, 128
  %2152 = vxpose.xlu0.b32.cont [2/16] %v2035, 128
  %2153 = vxpose.xlu0.b32.cont [3/16] %v2039, 128
  %2154 = vxpose.xlu0.b32.cont [4/16] %v2043, 128
  %2155 = vxpose.xlu0.b32.cont [5/16] 0.0, 128
  %2156 = vxpose.xlu0.b32.cont [6/16] 0.0, 128
  %2157 = vxpose.xlu0.b32.cont [7/16] 0.0, 128
  %2158 = vxpose.xlu0.b32.cont [8/16] 0.0, 128
  %2159 = vxpose.xlu0.b32.cont [9/16] 0.0, 128
  %2160 = vxpose.xlu0.b32.cont [10/16] 0.0, 128
  %2161 = vxpose.xlu0.b32.cont [11/16] 0.0, 128
  %2162 = vxpose.xlu0.b32.cont [12/16] 0.0, 128
  %2163 = vxpose.xlu0.b32.cont [13/16] 0.0, 128
  %2164 = vxpose.xlu0.b32.cont [14/16] 0.0, 128
  %2165 = vxpose.xlu0.b32.cont [15/16] 0.0, 128
  %2166 = vxpose.xlu0.b32.end [16/16] 0.0, 128
  %v2167 = vpop.trf.xlu0
  %v2168 = vpop.trf.xlu0
  %v2169 = vpop.trf.xlu0
  %v2170 = vpop.trf.xlu0
  %v2171 = vpop.trf.xlu0
  %v2172 = vpop.trf.xlu0
  %v2173 = vpop.trf.xlu0
  %v2174 = vpop.trf.xlu0
  %v2175 = vpop.trf.xlu0
  %v2176 = vpop.trf.xlu0
  %v2177 = vpop.trf.xlu0
  %v2178 = vpop.trf.xlu0
  %v2179 = vpop.trf.xlu0
  %v2180 = vpop.trf.xlu0
  %v2181 = vpop.trf.xlu0
  %v2182 = vpop.trf.xlu0
  %v2184 = vsel %vm897, %v2071, 0
  %v2187 = vsel %vm897, %v2072, 0
  %v2190 = vsel %vm897, %v2073, 0
  %v2193 = vsel %vm897, %v2074, 0
  %v2196 = vsel %vm897, %v2075, 0
  %v2199 = vsel %vm897, %v2076, 0
  %v2202 = vsel %vm897, %v2077, 0
  %v2205 = vsel %vm897, %v2078, 0
  %v2208 = vsel %vm897, %v2079, 0
  %v2211 = vsel %vm897, %v2080, 0
  %v2214 = vsel %vm897, %v2081, 0
  %v2217 = vsel %vm897, %v2082, 0
  %v2220 = vsel %vm897, %v2083, 0
  %v2223 = vsel %vm897, %v2084, 0
  %v2226 = vsel %vm897, %v2085, 0
  %v2229 = vsel %vm897, %v2086, 0
  %v2232 = vsel %vm897, %v2103, 0
  %v2235 = vsel %vm897, %v2104, 0
  %v2238 = vsel %vm897, %v2105, 0
  %v2241 = vsel %vm897, %v2106, 0
  %v2244 = vsel %vm897, %v2107, 0
  %v2247 = vsel %vm897, %v2108, 0
  %v2250 = vsel %vm897, %v2109, 0
  %v2253 = vsel %vm897, %v2110, 0
  %v2256 = vsel %vm897, %v2111, 0
  %v2259 = vsel %vm897, %v2112, 0
  %v2262 = vsel %vm897, %v2113, 0
  %v2265 = vsel %vm897, %v2114, 0
  %v2268 = vsel %vm897, %v2115, 0
  %v2271 = vsel %vm897, %v2116, 0
  %v2274 = vsel %vm897, %v2117, 0
  %v2277 = vsel %vm897, %v2118, 0
  %v2280 = vsel %vm897, %v2135, 0
  %v2283 = vsel %vm897, %v2136, 0
  %v2286 = vsel %vm897, %v2137, 0
  %v2289 = vsel %vm897, %v2138, 0
  %v2292 = vsel %vm897, %v2139, 0
  %v2295 = vsel %vm897, %v2140, 0
  %v2298 = vsel %vm897, %v2141, 0
  %v2301 = vsel %vm897, %v2142, 0
  %v2304 = vsel %vm897, %v2143, 0
  %v2307 = vsel %vm897, %v2144, 0
  %v2310 = vsel %vm897, %v2145, 0
  %v2313 = vsel %vm897, %v2146, 0
  %v2316 = vsel %vm897, %v2147, 0
  %v2319 = vsel %vm897, %v2148, 0
  %v2322 = vsel %vm897, %v2149, 0
  %v2325 = vsel %vm897, %v2150, 0
  %v2328 = vsel %vm897, %v2167, 0
  %v2331 = vsel %vm897, %v2168, 0
  %v2334 = vsel %vm897, %v2169, 0
  %v2337 = vsel %vm897, %v2170, 0
  %v2340 = vsel %vm897, %v2171, 0
  %v2343 = vsel %vm897, %v2172, 0
  %v2346 = vsel %vm897, %v2173, 0
  %v2349 = vsel %vm897, %v2174, 0
  %v2352 = vsel %vm897, %v2175, 0
  %v2355 = vsel %vm897, %v2176, 0
  %v2358 = vsel %vm897, %v2177, 0
  %v2361 = vsel %vm897, %v2178, 0
  %v2364 = vsel %vm897, %v2179, 0
  %v2367 = vsel %vm897, %v2180, 0
  %v2370 = vsel %vm897, %v2181, 0
  %v2373 = vsel %vm897, %v2182, 0
  %2375 = vmatprep.subr.mxu0 0.0
  %2376 = vmatpush1.msra.mxu0 %v2044
  %2377 = vmatprep.subr.mxu0 0.0
  %2378 = vmatpush1.msra.mxu0 %v2045
  %2379 = vmatprep.subr.mxu0 0.0
  %2380 = vmatpush1.msra.mxu0 %v2046
  %2381 = vmatprep.subr.mxu0 0.0
  %2382 = vmatpush1.msra.mxu0 %v2047
  %2383 = vmatprep.subr.mxu0 0.0
  %2384 = vmatpush1.msra.mxu0 0.0
  %2385 = vmatprep.subr.mxu0 0.0
  %2386 = vmatpush1.msra.mxu0 0.0
  %2387 = vmatprep.subr.mxu0 0.0
  %2388 = vmatpush1.msra.mxu0 0.0
  %2389 = vmatprep.subr.mxu0 0.0
  %2390 = vmatpush1.msra.mxu0 0.0
  %2391 = vmatprep.subr.mxu0 0.0
  %2392 = vmatpush1.msra.mxu0 0.0
  %2393 = vmatprep.subr.mxu0 0.0
  %2394 = vmatpush1.msra.mxu0 0.0
  %2395 = vmatprep.subr.mxu0 0.0
  %2396 = vmatpush1.msra.mxu0 0.0
  %2397 = vmatprep.subr.mxu0 0.0
  %2398 = vmatpush1.msra.mxu0 0.0
  %2399 = vmatprep.subr.mxu0 0.0
  %2400 = vmatpush1.msra.mxu0 0.0
  %2401 = vmatprep.subr.mxu0 0.0
  %2402 = vmatpush1.msra.mxu0 0.0
  %2403 = vmatprep.subr.mxu0 0.0
  %2404 = vmatpush1.msra.mxu0 0.0
  %2405 = vmatprep.subr.mxu0 0.0
  %2406 = vmatpush1.msra.mxu0 0.0
  %2407 = vmatprep.subr.mxu0 0.0
  %2408 = vmatpush1.msra.mxu0 0.0
  %2409 = vmatprep.subr.mxu0 0.0
  %2410 = vmatpush1.msra.mxu0 0.0
  %2411 = vmatprep.subr.mxu0 0.0
  %2412 = vmatpush1.msra.mxu0 0.0
  %2413 = vmatprep.subr.mxu0 0.0
  %2414 = vmatpush1.msra.mxu0 0.0
  %2415 = vmatprep.subr.mxu0 0.0
  %2416 = vmatpush1.msra.mxu0 0.0
  %2417 = vmatprep.subr.mxu0 0.0
  %2418 = vmatpush1.msra.mxu0 0.0
  %2419 = vmatprep.subr.mxu0 0.0
  %2420 = vmatpush1.msra.mxu0 0.0
  %2421 = vmatprep.subr.mxu0 0.0
  %2422 = vmatpush1.msra.mxu0 0.0
  %2423 = vmatprep.subr.mxu0 0.0
  %2424 = vmatpush1.msra.mxu0 0.0
  %2425 = vmatprep.subr.mxu0 0.0
  %2426 = vmatpush1.msra.mxu0 0.0
  %2427 = vmatprep.subr.mxu0 0.0
  %2428 = vmatpush1.msra.mxu0 0.0
  %2429 = vmatprep.subr.mxu0 0.0
  %2430 = vmatpush1.msra.mxu0 0.0
  %2431 = vmatprep.subr.mxu0 0.0
  %2432 = vmatpush1.msra.mxu0 0.0
  %2433 = vmatprep.subr.mxu0 0.0
  %2434 = vmatpush1.msra.mxu0 0.0
  %2435 = vmatprep.subr.mxu0 0.0
  %2436 = vmatpush1.msra.mxu0 0.0
  %2437 = vmatprep.subr.mxu0 0.0
  %2438 = vmatpush1.msra.mxu0 0.0
  %2439 = vmatprep.mubr.f32.mxu0 0.0
  %2440 = vmatmul.mubr.f32.gmra.mrb[0].mxu0 %v2184
  %v2441 = vpop.f32.mrb[0].mxu0
  %v2442 = vadd.f32 %v2053, %v2441
  %v2443 = vpop.f32.mrb[0].mxu0
  %2444 = vmatprep.mubr.f32.mxu0 0.0
  %2445 = vmatmul.mubr.f32.gmra.mrb[0].mxu0 %v2187
  %v2446 = vpop.f32.mrb[0].mxu0
  %v2447 = vadd.f32 %v2053, %v2446
  %v2448 = vpop.f32.mrb[0].mxu0
  %2449 = vmatprep.mubr.f32.mxu0 0.0
  %2450 = vmatmul.mubr.f32.gmra.mrb[0].mxu0 %v2190
  %v2451 = vpop.f32.mrb[0].mxu0
  %v2452 = vadd.f32 %v2053, %v2451
  %v2453 = vpop.f32.mrb[0].mxu0
  %2454 = vmatprep.mubr.f32.mxu0 0.0
  %2455 = vmatmul.mubr.f32.gmra.mrb[0].mxu0 %v2193
  %v2456 = vpop.f32.mrb[0].mxu0
  %v2457 = vadd.f32 %v2053, %v2456
  %v2458 = vpop.f32.mrb[0].mxu0
  %2459 = vmatprep.mubr.f32.mxu0 0.0
  %2460 = vmatmul.mubr.f32.gmra.mrb[0].mxu0 %v2196
  %v2461 = vpop.f32.mrb[0].mxu0
  %v2462 = vadd.f32 %v2053, %v2461
  %v2463 = vpop.f32.mrb[0].mxu0
  %2464 = vmatprep.mubr.f32.mxu0 0.0
  %2465 = vmatmul.mubr.f32.gmra.mrb[0].mxu0 %v2199
  %v2466 = vpop.f32.mrb[0].mxu0
  %v2467 = vadd.f32 %v2053, %v2466
  %v2468 = vpop.f32.mrb[0].mxu0
  %2469 = vmatprep.mubr.f32.mxu0 0.0
  %2470 = vmatmul.mubr.f32.gmra.mrb[0].mxu0 %v2202
  %v2471 = vpop.f32.mrb[0].mxu0
  %v2472 = vadd.f32 %v2053, %v2471
  %v2473 = vpop.f32.mrb[0].mxu0
  %2474 = vmatprep.mubr.f32.mxu0 0.0
  %2475 = vmatmul.mubr.f32.gmra.mrb[0].mxu0 %v2205
  %v2476 = vpop.f32.mrb[0].mxu0
  %v2477 = vadd.f32 %v2053, %v2476
  %v2478 = vpop.f32.mrb[0].mxu0
  %2479 = vmatprep.mubr.f32.mxu0 0.0
  %2480 = vmatmul.mubr.f32.gmra.mrb[0].mxu0 %v2208
  %v2481 = vpop.f32.mrb[0].mxu0
  %v2482 = vadd.f32 %v2053, %v2481
  %v2483 = vpop.f32.mrb[0].mxu0
  %2484 = vmatprep.mubr.f32.mxu0 0.0
  %2485 = vmatmul.mubr.f32.gmra.mrb[0].mxu0 %v2211
  %v2486 = vpop.f32.mrb[0].mxu0
  %v2487 = vadd.f32 %v2053, %v2486
  %v2488 = vpop.f32.mrb[0].mxu0
  %2489 = vmatprep.mubr.f32.mxu0 0.0
  %2490 = vmatmul.mubr.f32.gmra.mrb[0].mxu0 %v2214
  %v2491 = vpop.f32.mrb[0].mxu0
  %v2492 = vadd.f32 %v2053, %v2491
  %v2493 = vpop.f32.mrb[0].mxu0
  %2494 = vmatprep.mubr.f32.mxu0 0.0
  %2495 = vmatmul.mubr.f32.gmra.mrb[0].mxu0 %v2217
  %v2496 = vpop.f32.mrb[0].mxu0
  %v2497 = vadd.f32 %v2053, %v2496
  %v2498 = vpop.f32.mrb[0].mxu0
  %2499 = vmatprep.mubr.f32.mxu0 0.0
  %2500 = vmatmul.mubr.f32.gmra.mrb[0].mxu0 %v2220
  %v2501 = vpop.f32.mrb[0].mxu0
  %v2502 = vadd.f32 %v2053, %v2501
  %v2503 = vpop.f32.mrb[0].mxu0
  %2504 = vmatprep.mubr.f32.mxu0 0.0
  %2505 = vmatmul.mubr.f32.gmra.mrb[0].mxu0 %v2223
  %v2506 = vpop.f32.mrb[0].mxu0
  %v2507 = vadd.f32 %v2053, %v2506
  %v2508 = vpop.f32.mrb[0].mxu0
  %2509 = vmatprep.mubr.f32.mxu0 0.0
  %2510 = vmatmul.mubr.f32.gmra.mrb[0].mxu0 %v2226
  %v2511 = vpop.f32.mrb[0].mxu0
  %v2512 = vadd.f32 %v2053, %v2511
  %v2513 = vpop.f32.mrb[0].mxu0
  %2514 = vmatprep.mubr.f32.mxu0 0.0
  %2515 = vmatmul.mubr.f32.gmra.mrb[0].mxu0 %v2229
  %v2516 = vpop.f32.mrb[0].mxu0
  %v2517 = vadd.f32 %v2053, %v2516
  %v2518 = vpop.f32.mrb[0].mxu0
  %2519 = vmatprep.mubr.f32.mxu0 0.0
  %2520 = vmatmul.mubr.f32.gmra.mrb[0].mxu0 %v2232
  %v2521 = vpop.f32.mrb[0].mxu0
  %v2522 = vadd.f32 %v2053, %v2521
  %v2523 = vpop.f32.mrb[0].mxu0
  %2524 = vmatprep.mubr.f32.mxu0 0.0
  %2525 = vmatmul.mubr.f32.gmra.mrb[0].mxu0 %v2235
  %v2526 = vpop.f32.mrb[0].mxu0
  %v2527 = vadd.f32 %v2053, %v2526
  %v2528 = vpop.f32.mrb[0].mxu0
  %2529 = vmatprep.mubr.f32.mxu0 0.0
  %2530 = vmatmul.mubr.f32.gmra.mrb[0].mxu0 %v2238
  %v2531 = vpop.f32.mrb[0].mxu0
  %v2532 = vadd.f32 %v2053, %v2531
  %v2533 = vpop.f32.mrb[0].mxu0
  %2534 = vmatprep.mubr.f32.mxu0 0.0
  %2535 = vmatmul.mubr.f32.gmra.mrb[0].mxu0 %v2241
  %v2536 = vpop.f32.mrb[0].mxu0
  %v2537 = vadd.f32 %v2053, %v2536
  %v2538 = vpop.f32.mrb[0].mxu0
  %2539 = vmatprep.mubr.f32.mxu0 0.0
  %2540 = vmatmul.mubr.f32.gmra.mrb[0].mxu0 %v2244
  %v2541 = vpop.f32.mrb[0].mxu0
  %v2542 = vadd.f32 %v2053, %v2541
  %v2543 = vpop.f32.mrb[0].mxu0
  %2544 = vmatprep.mubr.f32.mxu0 0.0
  %2545 = vmatmul.mubr.f32.gmra.mrb[0].mxu0 %v2247
  %v2546 = vpop.f32.mrb[0].mxu0
  %v2547 = vadd.f32 %v2053, %v2546
  %v2548 = vpop.f32.mrb[0].mxu0
  %2549 = vmatprep.mubr.f32.mxu0 0.0
  %2550 = vmatmul.mubr.f32.gmra.mrb[0].mxu0 %v2250
  %v2551 = vpop.f32.mrb[0].mxu0
  %v2552 = vadd.f32 %v2053, %v2551
  %v2553 = vpop.f32.mrb[0].mxu0
  %2554 = vmatprep.mubr.f32.mxu0 0.0
  %2555 = vmatmul.mubr.f32.gmra.mrb[0].mxu0 %v2253
  %v2556 = vpop.f32.mrb[0].mxu0
  %v2557 = vadd.f32 %v2053, %v2556
  %v2558 = vpop.f32.mrb[0].mxu0
  %2559 = vmatprep.mubr.f32.mxu0 0.0
  %2560 = vmatmul.mubr.f32.gmra.mrb[0].mxu0 %v2256
  %v2561 = vpop.f32.mrb[0].mxu0
  %v2562 = vadd.f32 %v2053, %v2561
  %v2563 = vpop.f32.mrb[0].mxu0
  %2564 = vmatprep.mubr.f32.mxu0 0.0
  %2565 = vmatmul.mubr.f32.gmra.mrb[0].mxu0 %v2259
  %v2566 = vpop.f32.mrb[0].mxu0
  %v2567 = vadd.f32 %v2053, %v2566
  %v2568 = vpop.f32.mrb[0].mxu0
  %2569 = vmatprep.mubr.f32.mxu0 0.0
  %2570 = vmatmul.mubr.f32.gmra.mrb[0].mxu0 %v2262
  %v2571 = vpop.f32.mrb[0].mxu0
  %v2572 = vadd.f32 %v2053, %v2571
  %v2573 = vpop.f32.mrb[0].mxu0
  %2574 = vmatprep.mubr.f32.mxu0 0.0
  %2575 = vmatmul.mubr.f32.gmra.mrb[0].mxu0 %v2265
  %v2576 = vpop.f32.mrb[0].mxu0
  %v2577 = vadd.f32 %v2053, %v2576
  %v2578 = vpop.f32.mrb[0].mxu0
  %2579 = vmatprep.mubr.f32.mxu0 0.0
  %2580 = vmatmul.mubr.f32.gmra.mrb[0].mxu0 %v2268
  %v2581 = vpop.f32.mrb[0].mxu0
  %v2582 = vadd.f32 %v2053, %v2581
  %v2583 = vpop.f32.mrb[0].mxu0
  %2584 = vmatprep.mubr.f32.mxu0 0.0
  %2585 = vmatmul.mubr.f32.gmra.mrb[0].mxu0 %v2271
  %v2586 = vpop.f32.mrb[0].mxu0
  %v2587 = vadd.f32 %v2053, %v2586
  %v2588 = vpop.f32.mrb[0].mxu0
  %2589 = vmatprep.mubr.f32.mxu0 0.0
  %2590 = vmatmul.mubr.f32.gmra.mrb[0].mxu0 %v2274
  %v2591 = vpop.f32.mrb[0].mxu0
  %v2592 = vadd.f32 %v2053, %v2591
  %v2593 = vpop.f32.mrb[0].mxu0
  %2594 = vmatprep.mubr.f32.mxu0 0.0
  %2595 = vmatmul.mubr.f32.gmra.mrb[0].mxu0 %v2277
  %v2596 = vpop.f32.mrb[0].mxu0
  %v2597 = vadd.f32 %v2053, %v2596
  %v2598 = vpop.f32.mrb[0].mxu0
  %2599 = vmatprep.mubr.f32.mxu0 0.0
  %2600 = vmatmul.mubr.f32.gmra.mrb[0].mxu0 %v2280
  %v2601 = vpop.f32.mrb[0].mxu0
  %v2602 = vadd.f32 %v2053, %v2601
  %v2603 = vpop.f32.mrb[0].mxu0
  %2604 = vmatprep.mubr.f32.mxu0 0.0
  %2605 = vmatmul.mubr.f32.gmra.mrb[0].mxu0 %v2283
  %v2606 = vpop.f32.mrb[0].mxu0
  %v2607 = vadd.f32 %v2053, %v2606
  %v2608 = vpop.f32.mrb[0].mxu0
  %2609 = vmatprep.mubr.f32.mxu0 0.0
  %2610 = vmatmul.mubr.f32.gmra.mrb[0].mxu0 %v2286
  %v2611 = vpop.f32.mrb[0].mxu0
  %v2612 = vadd.f32 %v2053, %v2611
  %v2613 = vpop.f32.mrb[0].mxu0
  %2614 = vmatprep.mubr.f32.mxu0 0.0
  %2615 = vmatmul.mubr.f32.gmra.mrb[0].mxu0 %v2289
  %v2616 = vpop.f32.mrb[0].mxu0
  %v2617 = vadd.f32 %v2053, %v2616
  %v2618 = vpop.f32.mrb[0].mxu0
  %2619 = vmatprep.mubr.f32.mxu0 0.0
  %2620 = vmatmul.mubr.f32.gmra.mrb[0].mxu0 %v2292
  %v2621 = vpop.f32.mrb[0].mxu0
  %v2622 = vadd.f32 %v2053, %v2621
  %v2623 = vpop.f32.mrb[0].mxu0
  %2624 = vmatprep.mubr.f32.mxu0 0.0
  %2625 = vmatmul.mubr.f32.gmra.mrb[0].mxu0 %v2295
  %v2626 = vpop.f32.mrb[0].mxu0
  %v2627 = vadd.f32 %v2053, %v2626
  %v2628 = vpop.f32.mrb[0].mxu0
  %2629 = vmatprep.mubr.f32.mxu0 0.0
  %2630 = vmatmul.mubr.f32.gmra.mrb[0].mxu0 %v2298
  %v2631 = vpop.f32.mrb[0].mxu0
  %v2632 = vadd.f32 %v2053, %v2631
  %v2633 = vpop.f32.mrb[0].mxu0
  %2634 = vmatprep.mubr.f32.mxu0 0.0
  %2635 = vmatmul.mubr.f32.gmra.mrb[0].mxu0 %v2301
  %v2636 = vpop.f32.mrb[0].mxu0
  %v2637 = vadd.f32 %v2053, %v2636
  %v2638 = vpop.f32.mrb[0].mxu0
  %2639 = vmatprep.mubr.f32.mxu0 0.0
  %2640 = vmatmul.mubr.f32.gmra.mrb[0].mxu0 %v2304
  %v2641 = vpop.f32.mrb[0].mxu0
  %v2642 = vadd.f32 %v2053, %v2641
  %v2643 = vpop.f32.mrb[0].mxu0
  %2644 = vmatprep.mubr.f32.mxu0 0.0
  %2645 = vmatmul.mubr.f32.gmra.mrb[0].mxu0 %v2307
  %v2646 = vpop.f32.mrb[0].mxu0
  %v2647 = vadd.f32 %v2053, %v2646
  %v2648 = vpop.f32.mrb[0].mxu0
  %2649 = vmatprep.mubr.f32.mxu0 0.0
  %2650 = vmatmul.mubr.f32.gmra.mrb[0].mxu0 %v2310
  %v2651 = vpop.f32.mrb[0].mxu0
  %v2652 = vadd.f32 %v2053, %v2651
  %v2653 = vpop.f32.mrb[0].mxu0
  %2654 = vmatprep.mubr.f32.mxu0 0.0
  %2655 = vmatmul.mubr.f32.gmra.mrb[0].mxu0 %v2313
  %v2656 = vpop.f32.mrb[0].mxu0
  %v2657 = vadd.f32 %v2053, %v2656
  %v2658 = vpop.f32.mrb[0].mxu0
  %2659 = vmatprep.mubr.f32.mxu0 0.0
  %2660 = vmatmul.mubr.f32.gmra.mrb[0].mxu0 %v2316
  %v2661 = vpop.f32.mrb[0].mxu0
  %v2662 = vadd.f32 %v2053, %v2661
  %v2663 = vpop.f32.mrb[0].mxu0
  %2664 = vmatprep.mubr.f32.mxu0 0.0
  %2665 = vmatmul.mubr.f32.gmra.mrb[0].mxu0 %v2319
  %v2666 = vpop.f32.mrb[0].mxu0
  %v2667 = vadd.f32 %v2053, %v2666
  %v2668 = vpop.f32.mrb[0].mxu0
  %2669 = vmatprep.mubr.f32.mxu0 0.0
  %2670 = vmatmul.mubr.f32.gmra.mrb[0].mxu0 %v2322
  %v2671 = vpop.f32.mrb[0].mxu0
  %v2672 = vadd.f32 %v2053, %v2671
  %v2673 = vpop.f32.mrb[0].mxu0
  %2674 = vmatprep.mubr.f32.mxu0 0.0
  %2675 = vmatmul.mubr.f32.gmra.mrb[0].mxu0 %v2325
  %v2676 = vpop.f32.mrb[0].mxu0
  %v2677 = vadd.f32 %v2053, %v2676
  %v2678 = vpop.f32.mrb[0].mxu0
  %2679 = vmatprep.mubr.f32.mxu0 0.0
  %2680 = vmatmul.mubr.f32.gmra.mrb[0].mxu0 %v2328
  %v2681 = vpop.f32.mrb[0].mxu0
  %v2682 = vadd.f32 %v2053, %v2681
  %v2683 = vpop.f32.mrb[0].mxu0
  %2684 = vmatprep.mubr.f32.mxu0 0.0
  %2685 = vmatmul.mubr.f32.gmra.mrb[0].mxu0 %v2331
  %v2686 = vpop.f32.mrb[0].mxu0
  %v2687 = vadd.f32 %v2053, %v2686
  %v2688 = vpop.f32.mrb[0].mxu0
  %2689 = vmatprep.mubr.f32.mxu0 0.0
  %2690 = vmatmul.mubr.f32.gmra.mrb[0].mxu0 %v2334
  %v2691 = vpop.f32.mrb[0].mxu0
  %v2692 = vadd.f32 %v2053, %v2691
  %v2693 = vpop.f32.mrb[0].mxu0
  %2694 = vmatprep.mubr.f32.mxu0 0.0
  %2695 = vmatmul.mubr.f32.gmra.mrb[0].mxu0 %v2337
  %v2696 = vpop.f32.mrb[0].mxu0
  %v2697 = vadd.f32 %v2053, %v2696
  %v2698 = vpop.f32.mrb[0].mxu0
  %2699 = vmatprep.mubr.f32.mxu0 0.0
  %2700 = vmatmul.mubr.f32.gmra.mrb[0].mxu0 %v2340
  %v2701 = vpop.f32.mrb[0].mxu0
  %v2702 = vadd.f32 %v2053, %v2701
  %v2703 = vpop.f32.mrb[0].mxu0
  %2704 = vmatprep.mubr.f32.mxu0 0.0
  %2705 = vmatmul.mubr.f32.gmra.mrb[0].mxu0 %v2343
  %v2706 = vpop.f32.mrb[0].mxu0
  %v2707 = vadd.f32 %v2053, %v2706
  %v2708 = vpop.f32.mrb[0].mxu0
  %2709 = vmatprep.mubr.f32.mxu0 0.0
  %2710 = vmatmul.mubr.f32.gmra.mrb[0].mxu0 %v2346
  %v2711 = vpop.f32.mrb[0].mxu0
  %v2712 = vadd.f32 %v2053, %v2711
  %v2713 = vpop.f32.mrb[0].mxu0
  %2714 = vmatprep.mubr.f32.mxu0 0.0
  %2715 = vmatmul.mubr.f32.gmra.mrb[0].mxu0 %v2349
  %v2716 = vpop.f32.mrb[0].mxu0
  %v2717 = vadd.f32 %v2053, %v2716
  %v2718 = vpop.f32.mrb[0].mxu0
  %2719 = vmatprep.mubr.f32.mxu0 0.0
  %2720 = vmatmul.mubr.f32.gmra.mrb[0].mxu0 %v2352
  %v2721 = vpop.f32.mrb[0].mxu0
  %v2722 = vadd.f32 %v2053, %v2721
  %v2723 = vpop.f32.mrb[0].mxu0
  %2724 = vmatprep.mubr.f32.mxu0 0.0
  %2725 = vmatmul.mubr.f32.gmra.mrb[0].mxu0 %v2355
  %v2726 = vpop.f32.mrb[0].mxu0
  %v2727 = vadd.f32 %v2053, %v2726
  %v2728 = vpop.f32.mrb[0].mxu0
  %2729 = vmatprep.mubr.f32.mxu0 0.0
  %2730 = vmatmul.mubr.f32.gmra.mrb[0].mxu0 %v2358
  %v2731 = vpop.f32.mrb[0].mxu0
  %v2732 = vadd.f32 %v2053, %v2731
  %v2733 = vpop.f32.mrb[0].mxu0
  %2734 = vmatprep.mubr.f32.mxu0 0.0
  %2735 = vmatmul.mubr.f32.gmra.mrb[0].mxu0 %v2361
  %v2736 = vpop.f32.mrb[0].mxu0
  %v2737 = vadd.f32 %v2053, %v2736
  %v2738 = vpop.f32.mrb[0].mxu0
  %2739 = vmatprep.mubr.f32.mxu0 0.0
  %2740 = vmatmul.mubr.f32.gmra.mrb[0].mxu0 %v2364
  %v2741 = vpop.f32.mrb[0].mxu0
  %v2742 = vadd.f32 %v2053, %v2741
  %v2743 = vpop.f32.mrb[0].mxu0
  %2744 = vmatprep.mubr.f32.mxu0 0.0
  %2745 = vmatmul.mubr.f32.gmra.mrb[0].mxu0 %v2367
  %v2746 = vpop.f32.mrb[0].mxu0
  %v2747 = vadd.f32 %v2053, %v2746
  %v2748 = vpop.f32.mrb[0].mxu0
  %2749 = vmatprep.mubr.f32.mxu0 0.0
  %2750 = vmatmul.mubr.f32.gmra.mrb[0].mxu0 %v2370
  %v2751 = vpop.f32.mrb[0].mxu0
  %v2752 = vadd.f32 %v2053, %v2751
  %v2753 = vpop.f32.mrb[0].mxu0
  %2754 = vmatprep.mubr.f32.mxu0 0.0
  %2755 = vmatmul.mubr.f32.gmra.mrb[0].mxu0 %v2373
  %v2756 = vpop.f32.mrb[0].mxu0
  %v2757 = vadd.f32 %v2053, %v2756
  %v2758 = vpop.f32.mrb[0].mxu0
  %2759 = vdwg.mxu0
  %2760 = vst.msk [vmem:[%s7] sm:$0xff] %vm118, %v2442
  %2761 = vst.msk [vmem:[%s7 + $0x8] sm:$0xff] %vm118, %v2447
  %2762 = vst.msk [vmem:[%s7 + $0x10] sm:$0xff] %vm118, %v2452
  %2763 = vst.msk [vmem:[%s7 + $0x18] sm:$0xff] %vm118, %v2457
  %2764 = vst.msk [vmem:[%s7 + $0x20] sm:$0xff] %vm118, %v2462
  %2765 = vst.msk [vmem:[%s7 + $0x28] sm:$0xff] %vm118, %v2467
  %2766 = vst.msk [vmem:[%s7 + $0x30] sm:$0xff] %vm118, %v2472
  %2767 = vst.msk [vmem:[%s7 + $0x38] sm:$0xff] %vm118, %v2477
  %2768 = vst.msk [vmem:[%s7 + $0x40] sm:$0xff] %vm118, %v2482
  %2769 = vst.msk [vmem:[%s7 + $0x48] sm:$0xff] %vm118, %v2487
  %2770 = vst.msk [vmem:[%s7 + $0x50] sm:$0xff] %vm118, %v2492
  %2771 = vst.msk [vmem:[%s7 + $0x58] sm:$0xff] %vm118, %v2497
  %2772 = vst.msk [vmem:[%s7 + $0x60] sm:$0xff] %vm118, %v2502
  %2773 = vst.msk [vmem:[%s7 + $0x68] sm:$0xff] %vm118, %v2507
  %2774 = vst.msk [vmem:[%s7 + $0x70] sm:$0xff] %vm118, %v2512
  %2775 = vst.msk [vmem:[%s7 + $0x78] sm:$0xff] %vm118, %v2517
  %2776 = vst.msk [vmem:[%s7 + $0x80] sm:$0xff] %vm118, %v2522
  %2777 = vst.msk [vmem:[%s7 + $0x88] sm:$0xff] %vm118, %v2527
  %2778 = vst.msk [vmem:[%s7 + $0x90] sm:$0xff] %vm118, %v2532
  %2779 = vst.msk [vmem:[%s7 + $0x98] sm:$0xff] %vm118, %v2537
  %2780 = vst.msk [vmem:[%s7 + $0xa0] sm:$0xff] %vm118, %v2542
  %2781 = vst.msk [vmem:[%s7 + $0xa8] sm:$0xff] %vm118, %v2547
  %2782 = vst.msk [vmem:[%s7 + $0xb0] sm:$0xff] %vm118, %v2552
  %2783 = vst.msk [vmem:[%s7 + $0xb8] sm:$0xff] %vm118, %v2557
  %2784 = vst.msk [vmem:[%s7 + $0xc0] sm:$0xff] %vm118, %v2562
  %2785 = vst.msk [vmem:[%s7 + $0xc8] sm:$0xff] %vm118, %v2567
  %2786 = vst.msk [vmem:[%s7 + $0xd0] sm:$0xff] %vm118, %v2572
  %2787 = vst.msk [vmem:[%s7 + $0xd8] sm:$0xff] %vm118, %v2577
  %2788 = vst.msk [vmem:[%s7 + $0xe0] sm:$0xff] %vm118, %v2582
  %2789 = vst.msk [vmem:[%s7 + $0xe8] sm:$0xff] %vm118, %v2587
  %2790 = vst.msk [vmem:[%s7 + $0xf0] sm:$0xff] %vm118, %v2592
  %2791 = vst.msk [vmem:[%s7 + $0xf8] sm:$0xff] %vm118, %v2597
  %2792 = vst.msk [vmem:[%s7 + $0x100] sm:$0xff] %vm118, %v2602
  %2793 = vst.msk [vmem:[%s7 + $0x108] sm:$0xff] %vm118, %v2607
  %2794 = vst.msk [vmem:[%s7 + $0x110] sm:$0xff] %vm118, %v2612
  %2795 = vst.msk [vmem:[%s7 + $0x118] sm:$0xff] %vm118, %v2617
  %2796 = vst.msk [vmem:[%s7 + $0x120] sm:$0xff] %vm118, %v2622
  %2797 = vst.msk [vmem:[%s7 + $0x128] sm:$0xff] %vm118, %v2627
  %2798 = vst.msk [vmem:[%s7 + $0x130] sm:$0xff] %vm118, %v2632
  %2799 = vst.msk [vmem:[%s7 + $0x138] sm:$0xff] %vm118, %v2637
  %2800 = vst.msk [vmem:[%s7 + $0x140] sm:$0xff] %vm118, %v2642
  %2801 = vst.msk [vmem:[%s7 + $0x148] sm:$0xff] %vm118, %v2647
  %2802 = vst.msk [vmem:[%s7 + $0x150] sm:$0xff] %vm118, %v2652
  %2803 = vst.msk [vmem:[%s7 + $0x158] sm:$0xff] %vm118, %v2657
  %2804 = vst.msk [vmem:[%s7 + $0x160] sm:$0xff] %vm118, %v2662
  %2805 = vst.msk [vmem:[%s7 + $0x168] sm:$0xff] %vm118, %v2667
  %2806 = vst.msk [vmem:[%s7 + $0x170] sm:$0xff] %vm118, %v2672
  %2807 = vst.msk [vmem:[%s7 + $0x178] sm:$0xff] %vm118, %v2677
  %2808 = vst.msk [vmem:[%s7 + $0x180] sm:$0xff] %vm118, %v2682
  %2809 = vst.msk [vmem:[%s7 + $0x188] sm:$0xff] %vm118, %v2687
  %2810 = vst.msk [vmem:[%s7 + $0x190] sm:$0xff] %vm118, %v2692
  %2811 = vst.msk [vmem:[%s7 + $0x198] sm:$0xff] %vm118, %v2697
  %2812 = vst.msk [vmem:[%s7 + $0x1a0] sm:$0xff] %vm118, %v2702
  %2813 = vst.msk [vmem:[%s7 + $0x1a8] sm:$0xff] %vm118, %v2707
  %2814 = vst.msk [vmem:[%s7 + $0x1b0] sm:$0xff] %vm118, %v2712
  %2815 = vst.msk [vmem:[%s7 + $0x1b8] sm:$0xff] %vm118, %v2717
  %2816 = vst.msk [vmem:[%s7 + $0x1c0] sm:$0xff] %vm118, %v2722
  %2817 = vst.msk [vmem:[%s7 + $0x1c8] sm:$0xff] %vm118, %v2727
  %2818 = vst.msk [vmem:[%s7 + $0x1d0] sm:$0xff] %vm118, %v2732
  %2819 = vst.msk [vmem:[%s7 + $0x1d8] sm:$0xff] %vm118, %v2737
  %2820 = vst.msk [vmem:[%s7 + $0x1e0] sm:$0xff] %vm118, %v2742
  %2821 = vst.msk [vmem:[%s7 + $0x1e8] sm:$0xff] %vm118, %v2747
  %2822 = vst.msk [vmem:[%s7 + $0x1f0] sm:$0xff] %vm118, %v2752
  %2823 = vst.msk [vmem:[%s7 + $0x1f8] sm:$0xff] %vm118, %v2757
  // Predicated region
  $region30: #{_lambda_.1} parent=0 // pred_check
    _
  $region31: #{_lambda_.1} parent=0 // pred_check_branch
    %2825 = sbr.rel (0) target = $region33
  $region32: #{_lambda_.1} parent=0 // pred_region
    _
  $region33: #{_lambda_.1} parent=0 // pred_fallthru
    _
  // Predicated region
  $region34: #{_lambda_.1} parent=0 // pred_check
    _
  $region35: #{_lambda_.1} parent=0 // pred_check_branch
    %2827 = sbr.rel (0) target = $region37
  $region36: #{_lambda_.1} parent=0 // pred_region
    _
  $region37: #{_lambda_.1} parent=0 // pred_fallthru
    _

</llo_original>
